<compile_context>
chip_gen: v7x
topology: tpu7x:2x2x1
jax: 0.10.0
libtpu: 0.0.40
codegen_flags: <defaults>
</compile_context>

<pallas_src>
import functools

import jax
import jax.numpy as jnp
from jax.experimental import pallas as pl
from jax.experimental.pallas import tpu as pltpu


def get_node_feature_dims():
    return [119, 5, 12, 12, 10, 6, 6, 2, 2]


FEATURE_DIMS = get_node_feature_dims()
NUM_FEATURES = len(FEATURE_DIMS)          # 9
SLAB = 128                                # one vreg lane-slab
D_PAD = 2 * SLAB                          # slab 0: feature 0; slab 1: features 1..8

# Row offsets of features 1..8 *within* slab 1 (compile-time Python ints).
SLAB1_OFFSETS = []
_off = 0
for _d in FEATURE_DIMS[1:]:
    SLAB1_OFFSETS.append(_off)
    _off += _d
assert FEATURE_DIMS[0] <= SLAB and _off <= SLAB


def _node_encoder_kernel(x_ref, table_ref, out_ref, *, tile_n):
    # x_ref:     (tile_n, 9)   int32 categorical indices (assumed in-range,
    #                          matching nn.Embedding's valid-index contract)
    # table_ref: (256, E)      float32 slab-aligned concatenated tables
    # out_ref:   (tile_n, E)   float32
    idx = x_ref[...]
    col = jax.lax.broadcasted_iota(jnp.int32, (tile_n, SLAB), 1)

    # Slab 0: feature 0 only -> one compare, one convert.
    hot0 = (col == idx[:, 0:1]).astype(jnp.float32)

    # Slab 1: features 1..8. Each feature's offset is a Python int folded into
    # the compare target (no captured constant arrays). The hit columns are
    # disjoint, so the masks OR-accumulate with a single convert at the end.
    hit = col == (idx[:, 1:2] + SLAB1_OFFSETS[0])
    for i in range(2, NUM_FEATURES):
        hit = jnp.logical_or(hit, col == (idx[:, i:i + 1] + SLAB1_OFFSETS[i - 1]))
    hot1 = hit.astype(jnp.float32)

    acc = jnp.dot(hot0, table_ref[:SLAB, :], preferred_element_type=jnp.float32)
    acc = acc + jnp.dot(hot1, table_ref[SLAB:, :], preferred_element_type=jnp.float32)
    out_ref[...] = acc
    # TODO(synk): optional further VPU win — fold tiny vocabs into host-built
    # product tables ((5,12)->60, (12,10)->120, (6,6)->36, (2,2)->4) to cut the
    # compare count from 9 to 5; kept out for clarity/exactness of this version.


def node_encoder_forward(x, table, *, tile_n=256):
    """x: (N, 9) int32; table: (D_PAD, E) float32 slab-aligned. Returns (N, E) f32."""
    n, f = x.shape
    assert f == NUM_FEATURES
    d_pad, e = table.shape
    assert d_pad == D_PAD

    # Pad node count to a tile multiple (index 0 is valid for every feature);
    # padded rows are sliced off before returning.
    n_pad = pl.cdiv(n, tile_n) * tile_n
    if n_pad != n:
        x = jnp.pad(x, ((0, n_pad - n), (0, 0)))

    kernel = functools.partial(_node_encoder_kernel, tile_n=tile_n)

    out = pl.pallas_call(
        kernel,
        out_shape=jax.ShapeDtypeStruct((n_pad, e), jnp.float32),
        grid_spec=pltpu.PrefetchScalarGridSpec(
            num_scalar_prefetch=0,
            grid=(n_pad // tile_n,),
            in_specs=[
                pl.BlockSpec((tile_n, NUM_FEATURES), lambda i: (i, 0)),
                pl.BlockSpec((D_PAD, e), lambda i: (0, 0)),
            ],
            out_specs=pl.BlockSpec((tile_n, e), lambda i: (i, 0)),
        ),
        compiler_params=pltpu.CompilerParams(
            dimension_semantics=("parallel",)),
    )(x, table)
    return out[:n] if n_pad != n else out


def init_tables(key, emb_dim):
    """Xavier-uniform per-feature tables, placed into a slab-aligned (D_PAD, E) table."""
    tables = []
    for dim in FEATURE_DIMS:
        key, sub = jax.random.split(key)
        bound = (6.0 / (dim + emb_dim)) ** 0.5
        tables.append(jax.random.uniform(sub, (dim, emb_dim),
                                         minval=-bound, maxval=bound,
                                         dtype=jnp.float32))
    big = jnp.zeros((D_PAD, emb_dim), jnp.float32)
    big = big.at[:FEATURE_DIMS[0]].set(tables[0])              # slab 0
    for i in range(1, NUM_FEATURES):                            # slab 1
        r0 = SLAB + SLAB1_OFFSETS[i - 1]
        big = big.at[r0:r0 + FEATURE_DIMS[i]].set(tables[i])
    return big, tables


def reference_forward(x, tables):
    out = 0
    for i, t in enumerate(tables):
        out = out + t[x[:, i]]
    return out


if __name__ == "__main__":
    key = jax.random.PRNGKey(0)
    emb_dim = 128
    n_nodes = 500          # deliberately not a tile multiple: exercises padding path

    k_tab, k_idx = jax.random.split(key)
    table, per_feature_tables = init_tables(k_tab, emb_dim)

    # Deterministic random categorical indices, each within its feature's vocab.
    idx_cols = []
    for dim in FEATURE_DIMS:
        k_idx, sub = jax.random.split(k_idx)
        idx_cols.append(jax.random.randint(sub, (n_nodes, 1), 0, dim, dtype=jnp.int32))
    x = jnp.concatenate(idx_cols, axis=1)                      # (N, 9) int32

    out = node_encoder_forward(x, table, tile_n=256)
    out = jax.block_until_ready(out)

    ref = reference_forward(x, per_feature_tables)
    assert out.shape == (n_nodes, emb_dim)
    assert jnp.allclose(out, ref, atol=1e-5, rtol=1e-5)

    print("KERNEL_OK")
</pallas_src>

<mosaic_0001>
module attributes {stable_mosaic.version = 11 : i64} {
  func.func @_node_encoder_kernel(%arg0: i32, %arg1: memref<256x9xi32, #tpu.memory_space<vmem>>, %arg2: memref<256x128xf32, #tpu.memory_space<vmem>>, %arg3: memref<256x128xf32, #tpu.memory_space<vmem>>) attributes {dimension_semantics = [#tpu.dimension_semantics<parallel>], iteration_bounds = array<i64: 2>, scalar_prefetch = 0 : i64, scratch_operands = 0 : i64, tpu.core_type = #tpu.core_type<tc>, window_params = [{transform_indices = @transform_0, window_bounds = array<i64: 256, 9>}, {pipeline_mode = #tpu.pipeline_mode<synchronous>, transform_indices = @transform_1, window_bounds = array<i64: 256, 128>}, {transform_indices = @transform_2, window_bounds = array<i64: 256, 128>}]} {
    %c0 = arith.constant 0 : index
    %c0_0 = arith.constant 0 : index
    %0 = vector.load %arg1[%c0, %c0_0] : memref<256x9xi32, #tpu.memory_space<vmem>>, vector<256x9xi32>
    %1 = tpu.iota {dimensions = array<i32: 1>} : vector<256x128xi32>
    %2 = vector.extract_strided_slice %0 {offsets = [0, 0], sizes = [256, 1], strides = [1, 1]} : vector<256x9xi32> to vector<256x1xi32>
    %3 = vector.broadcast %2 : vector<256x1xi32> to vector<256x128xi32>
    %4 = arith.cmpi eq, %1, %3 : vector<256x128xi32>
    %5 = arith.extui %4 : vector<256x128xi1> to vector<256x128xi32>
    %6 = arith.sitofp %5 : vector<256x128xi32> to vector<256x128xf32>
    %7 = vector.extract_strided_slice %0 {offsets = [0, 1], sizes = [256, 1], strides = [1, 1]} : vector<256x9xi32> to vector<256x1xi32>
    %c0_i32 = arith.constant 0 : i32
    %8 = vector.broadcast %c0_i32 : i32 to vector<256x1xi32>
    %9 = arith.addi %7, %8 : vector<256x1xi32>
    %10 = vector.broadcast %9 : vector<256x1xi32> to vector<256x128xi32>
    %11 = arith.cmpi eq, %1, %10 : vector<256x128xi32>
    %12 = vector.extract_strided_slice %0 {offsets = [0, 2], sizes = [256, 1], strides = [1, 1]} : vector<256x9xi32> to vector<256x1xi32>
    %c5_i32 = arith.constant 5 : i32
    %13 = vector.broadcast %c5_i32 : i32 to vector<256x1xi32>
    %14 = arith.addi %12, %13 : vector<256x1xi32>
    %15 = vector.broadcast %14 : vector<256x1xi32> to vector<256x128xi32>
    %16 = arith.cmpi eq, %1, %15 : vector<256x128xi32>
    %17 = arith.ori %11, %16 : vector<256x128xi1>
    %18 = vector.extract_strided_slice %0 {offsets = [0, 3], sizes = [256, 1], strides = [1, 1]} : vector<256x9xi32> to vector<256x1xi32>
    %c17_i32 = arith.constant 17 : i32
    %19 = vector.broadcast %c17_i32 : i32 to vector<256x1xi32>
    %20 = arith.addi %18, %19 : vector<256x1xi32>
    %21 = vector.broadcast %20 : vector<256x1xi32> to vector<256x128xi32>
    %22 = arith.cmpi eq, %1, %21 : vector<256x128xi32>
    %23 = arith.ori %17, %22 : vector<256x128xi1>
    %24 = vector.extract_strided_slice %0 {offsets = [0, 4], sizes = [256, 1], strides = [1, 1]} : vector<256x9xi32> to vector<256x1xi32>
    %c29_i32 = arith.constant 29 : i32
    %25 = vector.broadcast %c29_i32 : i32 to vector<256x1xi32>
    %26 = arith.addi %24, %25 : vector<256x1xi32>
    %27 = vector.broadcast %26 : vector<256x1xi32> to vector<256x128xi32>
    %28 = arith.cmpi eq, %1, %27 : vector<256x128xi32>
    %29 = arith.ori %23, %28 : vector<256x128xi1>
    %30 = vector.extract_strided_slice %0 {offsets = [0, 5], sizes = [256, 1], strides = [1, 1]} : vector<256x9xi32> to vector<256x1xi32>
    %c39_i32 = arith.constant 39 : i32
    %31 = vector.broadcast %c39_i32 : i32 to vector<256x1xi32>
    %32 = arith.addi %30, %31 : vector<256x1xi32>
    %33 = vector.broadcast %32 : vector<256x1xi32> to vector<256x128xi32>
    %34 = arith.cmpi eq, %1, %33 : vector<256x128xi32>
    %35 = arith.ori %29, %34 : vector<256x128xi1>
    %36 = vector.extract_strided_slice %0 {offsets = [0, 6], sizes = [256, 1], strides = [1, 1]} : vector<256x9xi32> to vector<256x1xi32>
    %c45_i32 = arith.constant 45 : i32
    %37 = vector.broadcast %c45_i32 : i32 to vector<256x1xi32>
    %38 = arith.addi %36, %37 : vector<256x1xi32>
    %39 = vector.broadcast %38 : vector<256x1xi32> to vector<256x128xi32>
    %40 = arith.cmpi eq, %1, %39 : vector<256x128xi32>
    %41 = arith.ori %35, %40 : vector<256x128xi1>
    %42 = vector.extract_strided_slice %0 {offsets = [0, 7], sizes = [256, 1], strides = [1, 1]} : vector<256x9xi32> to vector<256x1xi32>
    %c51_i32 = arith.constant 51 : i32
    %43 = vector.broadcast %c51_i32 : i32 to vector<256x1xi32>
    %44 = arith.addi %42, %43 : vector<256x1xi32>
    %45 = vector.broadcast %44 : vector<256x1xi32> to vector<256x128xi32>
    %46 = arith.cmpi eq, %1, %45 : vector<256x128xi32>
    %47 = arith.ori %41, %46 : vector<256x128xi1>
    %48 = vector.extract_strided_slice %0 {offsets = [0, 8], sizes = [256, 1], strides = [1, 1]} : vector<256x9xi32> to vector<256x1xi32>
    %c53_i32 = arith.constant 53 : i32
    %49 = vector.broadcast %c53_i32 : i32 to vector<256x1xi32>
    %50 = arith.addi %48, %49 : vector<256x1xi32>
    %51 = vector.broadcast %50 : vector<256x1xi32> to vector<256x128xi32>
    %52 = arith.cmpi eq, %1, %51 : vector<256x128xi32>
    %53 = arith.ori %47, %52 : vector<256x128xi1>
    %54 = arith.extui %53 : vector<256x128xi1> to vector<256x128xi32>
    %55 = arith.sitofp %54 : vector<256x128xi32> to vector<256x128xf32>
    %c0_1 = arith.constant 0 : index
    %c0_2 = arith.constant 0 : index
    %56 = vector.load %arg2[%c0_1, %c0_2] : memref<256x128xf32, #tpu.memory_space<vmem>>, vector<128x128xf32>
    %cst = arith.constant dense<0.000000e+00> : vector<256x128xf32>
    %57 = tpu.matmul %6, %56, %cst {dimension_numbers = #tpu.dot_dimension_numbers<[1], [0], [0], [1], [0, 0, 1, 1], [], []>} : vector<256x128xf32>, vector<128x128xf32>, vector<256x128xf32> -> vector<256x128xf32>
    %c128 = arith.constant 128 : index
    %c0_3 = arith.constant 0 : index
    %58 = vector.load %arg2[%c128, %c0_3] : memref<256x128xf32, #tpu.memory_space<vmem>>, vector<128x128xf32>
    %cst_4 = arith.constant dense<0.000000e+00> : vector<256x128xf32>
    %59 = tpu.matmul %55, %58, %cst_4 {dimension_numbers = #tpu.dot_dimension_numbers<[1], [0], [0], [1], [0, 0, 1, 1], [], []>} : vector<256x128xf32>, vector<128x128xf32>, vector<256x128xf32> -> vector<256x128xf32>
    %60 = arith.addf %57, %59 : vector<256x128xf32>
    %c0_5 = arith.constant 0 : index
    %c0_6 = arith.constant 0 : index
    %61 = vector.load %arg3[%c0_5, %c0_6] : memref<256x128xf32, #tpu.memory_space<vmem>>, vector<256x128xf32>
    tpu.vector_store %arg3[%c0_5, %c0_6], %60 {strides = array<i32>} : memref<256x128xf32, #tpu.memory_space<vmem>>, vector<256x128xf32>,
    return
  }
  func.func @transform_0(%arg0: i32) -> (i32, i32) {
    %c0_i32 = arith.constant 0 : i32
    %c0_i32_0 = arith.constant 0 : i32
    return %arg0, %c0_i32 : i32, i32
  }
  func.func @transform_1(%arg0: i32) -> (i32, i32) {
    %c0_i32 = arith.constant 0 : i32
    %c0_i32_0 = arith.constant 0 : i32
    %c0_i32_1 = arith.constant 0 : i32
    return %c0_i32, %c0_i32_0 : i32, i32
  }
  func.func @transform_2(%arg0: i32) -> (i32, i32) {
    %c0_i32 = arith.constant 0 : i32
    %c0_i32_0 = arith.constant 0 : i32
    return %arg0, %c0_i32 : i32, i32
  }
}

</mosaic_0001>

<llo_original>
// kernel: tpu_custom_call.1
$region0: #{tpu_custom_call.1}
  #allocation0 [shape = 'u32[]', space=smem, size = 0x4, offset = 0x4, fixed_abs, tag = 'smem constant byte address 0x4 - core index']
  #allocation1 [shape = 'u32[144,128]{1,0:T(1,128)}', space=vmem, size = 0x12000, scoped, tag = 'internal scratch']
  %s0 = inlined_call_operand.vmem [shape: s32[512,9], index: 0, kind: input, shape index: {}]
  %s1 = inlined_call_operand.vmem [shape: f32[256,128], index: 1, kind: input, shape index: {}]
  %s2 = inlined_call_operand.hbm [shape: f32[512,128], index: 2, kind: output, shape index: {}]
  %s3 = sld [smem:[#allocation0]]
  $region41: #{tpu_custom_call.1} parent=0
    _
  %s5 = ssub.s32 1, %s3
  %s6 = scalar_select 0, %s5, %s3
  $region1: #{tpu_custom_call.1} parent=0
    #allocation2 [shape = 'u8[262144]{0}', space=vmem, size = 0x40000, scoped, tag = 'output window, operand 0']
    #allocation3 [shape = 's32[2]{0}', space=sflag, size = 0x8, scoped, tag = 'scoped memory for tpu_custom_call.1']
    %7 = vsyncpa [#allocation3], 0
    %s8 = scalar_lea.sflag [#allocation3], 1
    %9 = vsyncpa %s8, 0
    loop: start=0, step=1, limit=4
    $region2: #{tpu_custom_call.1} parent=1 // loop_pre_header
      _
    $region3: #{tpu_custom_call.1} parent=1 // loop_header
      %s11 = sphi 0, %s15
      %p12 = scmp.ge.s32.totalorder %s11, 4
      %s21 = sphi 0, %s23
      %s24 = sphi 0, %s21
      %s25 = sphi 0, %s24
      %s41 = sphi 0, %s25
      %s45 = sphi 0, %s45
      %s47 = sphi 0, %s45
      %s48 = sphi 0, %s47
      %s62 = sphi 0, %s48
      %s68 = sphi 0, %s70
      %s71 = sphi 0, %s68
      %s72 = sphi 0, %s71
      %s88 = sphi 0, %s72
    $region4: #{tpu_custom_call.1} parent=1 // loop_header_branch
      %14 = sbr.rel (%p12) target = $region8
    $region5: #{tpu_custom_call.1} parent=1 // loop_body
      %s16 = ssub.s32 %s11, 1
      %s17 = ssub.s32 %s11, 2
      %s18 = sadd.s32 %s11, 1
      %s19 = ssub.s32 %s11, %s18
      %p20 = scmp.eq.s32.totalorder %s19, 0
      %s22 = sadd.s32 %s21, 1
      %s23 = scalar_select %p20, %s21, %s22
      %p26 = pneg %p20
      %p27 = scmp.eq.s32.totalorder %s11, 1
      %p28 = por %p26, %p27
      %p29 = scmp.ne.s32.totalorder %s21, %s24
      %p30 = scmp.eq.s32.totalorder %s11, 0
      %p31 = por %p29, %p30
      %p32 = scmp.ne.s32.totalorder %s21, %s24
      %p33 = scmp.eq.s32.totalorder %s16, 1
      %p34 = por %p32, %p33
      %p35 = scmp.ne.s32.totalorder %s24, %s25
      %p36 = scmp.eq.s32.totalorder %s16, 0
      %p37 = por %p35, %p36
      %p38 = scmp.ne.s32.totalorder %s24, %s25
      %p39 = scmp.eq.s32.totalorder %s17, 1
      %p40 = por %p38, %p39
      %p42 = scmp.ne.s32.totalorder %s25, %s41
      %p43 = scmp.eq.s32.totalorder %s17, 0
      %p44 = por %p42, %p43
      %s46 = sadd.s32 %s45, 1
      %p49 = scmp.eq.s32.totalorder %s11, 1
      %p50 = scmp.ne.s32.totalorder %s45, %s47
      %p51 = scmp.eq.s32.totalorder %s11, 0
      %p52 = por %p50, %p51
      %p53 = scmp.ne.s32.totalorder %s45, %s47
      %p54 = scmp.eq.s32.totalorder %s16, 1
      %p55 = por %p53, %p54
      %p56 = scmp.ne.s32.totalorder %s47, %s48
      %p57 = scmp.eq.s32.totalorder %s16, 0
      %p58 = por %p56, %p57
      %p59 = scmp.ne.s32.totalorder %s47, %s48
      %p60 = scmp.eq.s32.totalorder %s17, 1
      %p61 = por %p59, %p60
      %p63 = scmp.ne.s32.totalorder %s48, %s62
      %p64 = scmp.eq.s32.totalorder %s17, 0
      %p65 = por %p63, %p64
      %s66 = ssub.s32 %s11, %s18
      %p67 = scmp.eq.s32.totalorder %s66, 0
      %s69 = sadd.s32 %s68, 1
      %s70 = scalar_select %p67, %s68, %s69
      %p73 = pneg %p67
      %p74 = scmp.eq.s32.totalorder %s11, 1
      %p75 = por %p73, %p74
      %p76 = scmp.ne.s32.totalorder %s68, %s71
      %p77 = scmp.eq.s32.totalorder %s11, 0
      %p78 = por %p76, %p77
      %p79 = scmp.ne.s32.totalorder %s68, %s71
      %p80 = scmp.eq.s32.totalorder %s16, 1
      %p81 = por %p79, %p80
      %p82 = scmp.ne.s32.totalorder %s71, %s72
      %p83 = scmp.eq.s32.totalorder %s16, 0
      %p84 = por %p82, %p83
      %p85 = scmp.ne.s32.totalorder %s71, %s72
      %p86 = scmp.eq.s32.totalorder %s17, 1
      %p87 = por %p85, %p86
      %p89 = scmp.ne.s32.totalorder %s72, %s88
      %p90 = scmp.eq.s32.totalorder %s17, 0
      %p91 = por %p89, %p90
      %p92 = scmp.le.s32.totalorder 1, %s11
      %p93 = scmp.lt.s32.totalorder %s11, 3
      %p94 = pnand %p92, %p93
      %p95 = pneg %p94
      // Predicated region
      $region9: #{tpu_custom_call.1} parent=5 // pred_check
        _
      $region10: #{tpu_custom_call.1} parent=5 // pred_check_branch
        %97 = sbr.rel (%p94) target = $region12
      $region11: #{tpu_custom_call.1} parent=5 // pred_region
        %s98 = ssub.s32 %s11, 1
        // Predicated region
        $region13: #{tpu_custom_call.1} parent=11 // pred_check
          %p99 = pneg %p58
        $region14: #{tpu_custom_call.1} parent=11 // pred_check_branch
          %101 = sbr.rel (%p99) target = $region16
        $region15: #{tpu_custom_call.1} parent=11 // pred_region
          _
        $region16: #{tpu_custom_call.1} parent=11 // pred_fallthru
          _
      $region12: #{tpu_custom_call.1} parent=5 // pred_fallthru
        _
      %p102 = scmp.lt.s32.totalorder %s11, 2
      // Predicated region
      $region17: #{tpu_custom_call.1} parent=5 // pred_check
        %p103 = pneg %p102
      $region18: #{tpu_custom_call.1} parent=5 // pred_check_branch
        %105 = sbr.rel (%p103) target = $region20
      $region19: #{tpu_custom_call.1} parent=5 // pred_region
        // Predicated region
        $region21: #{tpu_custom_call.1} parent=19 // pred_check
          %p106 = pneg %p31
        $region22: #{tpu_custom_call.1} parent=19 // pred_check_branch
          %108 = sbr.rel (%p106) target = $region24
        $region23: #{tpu_custom_call.1} parent=19 // pred_region
          %s109 = smul.u32 32, %s11
          %p110 = scmp.lt.s32.totalorder %s109, 63
          %s111 = scalar_select %p110, %s109, 63
          %s112 = smul.addr %s111, 8
          %s113 = scalar_lea.vmem %s0, %s112
          %s114 = smul.u32 32, %s11
        $region24: #{tpu_custom_call.1} parent=19 // pred_fallthru
          _
      $region20: #{tpu_custom_call.1} parent=5 // pred_fallthru
        _
      %p115 = scmp.le.s32.totalorder 1, %s11
      %p116 = scmp.lt.s32.totalorder %s11, 3
      %p117 = pnand %p115, %p116
      %p118 = pneg %p117
      // Predicated region
      $region25: #{tpu_custom_call.1} parent=5 // pred_check
        _
      $region26: #{tpu_custom_call.1} parent=5 // pred_check_branch
        %120 = sbr.rel (%p117) target = $region28
      $region27: #{tpu_custom_call.1} parent=5 // pred_region
        %s121 = ssub.s32 %s11, 1
        %s122 = smul.u32 32, %s16
        %p123 = scmp.lt.s32.totalorder %s122, 63
        %s124 = scalar_select %p123, %s122, 63
        %s125 = smul.addr %s124, 8
        %s126 = scalar_lea.vmem %s0, %s125
        %p127 = pneg %p37
        %p128 = pneg %p34
        %p129 = pneg %p58
        %p130 = pneg %p55
        %p131 = pneg %p84
        %p132 = pneg %p81
        %s133 = sand.u32 %s71, 1
        %s134 = scalar_lea.sflag [#allocation3], %s133
        %s135 = sand.u32 %s71, 1
        %s136 = smul.addr %s135, 256
        %s137 = scalar_lea.vmem [#allocation2], %s136
        %s138 = smul.u32 32, %s16
        %p139 = scmp.lt.s32.totalorder %s138, 63
        %s140 = scalar_select %p139, %s138, 63
        %s141 = smul.addr %s140, 8
        %s142 = scalar_lea.vmem %s0, %s141
        %s143 = smul.u32 32, %s16
        %s144 = smul.u32 32, %s16
        %v145 = vld [vmem:[%s142] sm:$0xff]
        %v146 = vld [vmem:[%s142 + $0x8] sm:$0xff]
        %v147 = vld [vmem:[%s142 + $0x10] sm:$0xff]
        %v148 = vld [vmem:[%s142 + $0x18] sm:$0xff]
        %v149 = vld [vmem:[%s142 + $0x20] sm:$0xff]
        %v150 = vld [vmem:[%s142 + $0x28] sm:$0xff]
        %v151 = vld [vmem:[%s142 + $0x30] sm:$0xff]
        %v152 = vld [vmem:[%s142 + $0x38] sm:$0xff]
        %v153 = vld [vmem:[%s142 + $0x40] sm:$0xff]
        %v154 = vld [vmem:[%s142 + $0x48] sm:$0xff]
        %v155 = vld [vmem:[%s142 + $0x50] sm:$0xff]
        %v156 = vld [vmem:[%s142 + $0x58] sm:$0xff]
        %v157 = vld [vmem:[%s142 + $0x60] sm:$0xff]
        %v158 = vld [vmem:[%s142 + $0x68] sm:$0xff]
        %v159 = vld [vmem:[%s142 + $0x70] sm:$0xff]
        %v160 = vld [vmem:[%s142 + $0x78] sm:$0xff]
        %v161 = vld [vmem:[%s142 + $0x80] sm:$0xff]
        %v162 = vld [vmem:[%s142 + $0x88] sm:$0xff]
        %v163 = vld [vmem:[%s142 + $0x90] sm:$0xff]
        %v164 = vld [vmem:[%s142 + $0x98] sm:$0xff]
        %v165 = vld [vmem:[%s142 + $0xa0] sm:$0xff]
        %v166 = vld [vmem:[%s142 + $0xa8] sm:$0xff]
        %v167 = vld [vmem:[%s142 + $0xb0] sm:$0xff]
        %v168 = vld [vmem:[%s142 + $0xb8] sm:$0xff]
        %v169 = vld [vmem:[%s142 + $0xc0] sm:$0xff]
        %v170 = vld [vmem:[%s142 + $0xc8] sm:$0xff]
        %v171 = vld [vmem:[%s142 + $0xd0] sm:$0xff]
        %v172 = vld [vmem:[%s142 + $0xd8] sm:$0xff]
        %v173 = vld [vmem:[%s142 + $0xe0] sm:$0xff]
        %v174 = vld [vmem:[%s142 + $0xe8] sm:$0xff]
        %v175 = vld [vmem:[%s142 + $0xf0] sm:$0xff]
        %v176 = vld [vmem:[%s142 + $0xf8] sm:$0xff]
        %v177 = vlaneseq
        %v178 = vand.u32 %v177, 127
        %179 = vset.pattern.permute.xlu0 0
        %180 = vperm.xlu0 %179, %v145
        %v181 = vpop.permute.xlu0 %180
        %182 = vset.pattern.permute.xlu0 0
        %183 = vperm.xlu0 %182, %v146
        %v184 = vpop.permute.xlu0 %183
        %185 = vset.pattern.permute.xlu0 0
        %186 = vperm.xlu0 %185, %v147
        %v187 = vpop.permute.xlu0 %186
        %188 = vset.pattern.permute.xlu0 0
        %189 = vperm.xlu0 %188, %v148
        %v190 = vpop.permute.xlu0 %189
        %191 = vset.pattern.permute.xlu0 0
        %192 = vperm.xlu0 %191, %v149
        %v193 = vpop.permute.xlu0 %192
        %194 = vset.pattern.permute.xlu0 0
        %195 = vperm.xlu0 %194, %v150
        %v196 = vpop.permute.xlu0 %195
        %197 = vset.pattern.permute.xlu0 0
        %198 = vperm.xlu0 %197, %v151
        %v199 = vpop.permute.xlu0 %198
        %200 = vset.pattern.permute.xlu0 0
        %201 = vperm.xlu0 %200, %v152
        %v202 = vpop.permute.xlu0 %201
        %203 = vset.pattern.permute.xlu0 0
        %204 = vperm.xlu0 %203, %v153
        %v205 = vpop.permute.xlu0 %204
        %206 = vset.pattern.permute.xlu0 0
        %207 = vperm.xlu0 %206, %v154
        %v208 = vpop.permute.xlu0 %207
        %209 = vset.pattern.permute.xlu0 0
        %210 = vperm.xlu0 %209, %v155
        %v211 = vpop.permute.xlu0 %210
        %212 = vset.pattern.permute.xlu0 0
        %213 = vperm.xlu0 %212, %v156
        %v214 = vpop.permute.xlu0 %213
        %215 = vset.pattern.permute.xlu0 0
        %216 = vperm.xlu0 %215, %v157
        %v217 = vpop.permute.xlu0 %216
        %218 = vset.pattern.permute.xlu0 0
        %219 = vperm.xlu0 %218, %v158
        %v220 = vpop.permute.xlu0 %219
        %221 = vset.pattern.permute.xlu0 0
        %222 = vperm.xlu0 %221, %v159
        %v223 = vpop.permute.xlu0 %222
        %224 = vset.pattern.permute.xlu0 0
        %225 = vperm.xlu0 %224, %v160
        %v226 = vpop.permute.xlu0 %225
        %227 = vset.pattern.permute.xlu0 0
        %228 = vperm.xlu0 %227, %v161
        %v229 = vpop.permute.xlu0 %228
        %230 = vset.pattern.permute.xlu0 0
        %231 = vperm.xlu0 %230, %v162
        %v232 = vpop.permute.xlu0 %231
        %233 = vset.pattern.permute.xlu0 0
        %234 = vperm.xlu0 %233, %v163
        %v235 = vpop.permute.xlu0 %234
        %236 = vset.pattern.permute.xlu0 0
        %237 = vperm.xlu0 %236, %v164
        %v238 = vpop.permute.xlu0 %237
        %239 = vset.pattern.permute.xlu0 0
        %240 = vperm.xlu0 %239, %v165
        %v241 = vpop.permute.xlu0 %240
        %242 = vset.pattern.permute.xlu0 0
        %243 = vperm.xlu0 %242, %v166
        %v244 = vpop.permute.xlu0 %243
        %245 = vset.pattern.permute.xlu0 0
        %246 = vperm.xlu0 %245, %v167
        %v247 = vpop.permute.xlu0 %246
        %248 = vset.pattern.permute.xlu0 0
        %249 = vperm.xlu0 %248, %v168
        %v250 = vpop.permute.xlu0 %249
        %251 = vset.pattern.permute.xlu0 0
        %252 = vperm.xlu0 %251, %v169
        %v253 = vpop.permute.xlu0 %252
        %254 = vset.pattern.permute.xlu0 0
        %255 = vperm.xlu0 %254, %v170
        %v256 = vpop.permute.xlu0 %255
        %257 = vset.pattern.permute.xlu0 0
        %258 = vperm.xlu0 %257, %v171
        %v259 = vpop.permute.xlu0 %258
        %260 = vset.pattern.permute.xlu0 0
        %261 = vperm.xlu0 %260, %v172
        %v262 = vpop.permute.xlu0 %261
        %263 = vset.pattern.permute.xlu0 0
        %264 = vperm.xlu0 %263, %v173
        %v265 = vpop.permute.xlu0 %264
        %266 = vset.pattern.permute.xlu0 0
        %267 = vperm.xlu0 %266, %v174
        %v268 = vpop.permute.xlu0 %267
        %269 = vset.pattern.permute.xlu0 0
        %270 = vperm.xlu0 %269, %v175
        %v271 = vpop.permute.xlu0 %270
        %272 = vset.pattern.permute.xlu0 0
        %273 = vperm.xlu0 %272, %v176
        %v274 = vpop.permute.xlu0 %273
        %vm275 = vcmp.eq.s32.totalorder %v178, %v181
        %vm276 = vcmp.eq.s32.totalorder %v178, %v184
        %vm277 = vcmp.eq.s32.totalorder %v178, %v187
        %vm278 = vcmp.eq.s32.totalorder %v178, %v190
        %vm279 = vcmp.eq.s32.totalorder %v178, %v193
        %vm280 = vcmp.eq.s32.totalorder %v178, %v196
        %vm281 = vcmp.eq.s32.totalorder %v178, %v199
        %vm282 = vcmp.eq.s32.totalorder %v178, %v202
        %vm283 = vcmp.eq.s32.totalorder %v178, %v205
        %vm284 = vcmp.eq.s32.totalorder %v178, %v208
        %vm285 = vcmp.eq.s32.totalorder %v178, %v211
        %vm286 = vcmp.eq.s32.totalorder %v178, %v214
        %vm287 = vcmp.eq.s32.totalorder %v178, %v217
        %vm288 = vcmp.eq.s32.totalorder %v178, %v220
        %vm289 = vcmp.eq.s32.totalorder %v178, %v223
        %vm290 = vcmp.eq.s32.totalorder %v178, %v226
        %vm291 = vcmp.eq.s32.totalorder %v178, %v229
        %vm292 = vcmp.eq.s32.totalorder %v178, %v232
        %vm293 = vcmp.eq.s32.totalorder %v178, %v235
        %vm294 = vcmp.eq.s32.totalorder %v178, %v238
        %vm295 = vcmp.eq.s32.totalorder %v178, %v241
        %vm296 = vcmp.eq.s32.totalorder %v178, %v244
        %vm297 = vcmp.eq.s32.totalorder %v178, %v247
        %vm298 = vcmp.eq.s32.totalorder %v178, %v250
        %vm299 = vcmp.eq.s32.totalorder %v178, %v253
        %vm300 = vcmp.eq.s32.totalorder %v178, %v256
        %vm301 = vcmp.eq.s32.totalorder %v178, %v259
        %vm302 = vcmp.eq.s32.totalorder %v178, %v262
        %vm303 = vcmp.eq.s32.totalorder %v178, %v265
        %vm304 = vcmp.eq.s32.totalorder %v178, %v268
        %vm305 = vcmp.eq.s32.totalorder %v178, %v271
        %vm306 = vcmp.eq.s32.totalorder %v178, %v274
        %v307 = vsel %vm275, 1, 0
        %v308 = vsel %vm276, 1, 0
        %v309 = vsel %vm277, 1, 0
        %v310 = vsel %vm278, 1, 0
        %v311 = vsel %vm279, 1, 0
        %v312 = vsel %vm280, 1, 0
        %v313 = vsel %vm281, 1, 0
        %v314 = vsel %vm282, 1, 0
        %v315 = vsel %vm283, 1, 0
        %v316 = vsel %vm284, 1, 0
        %v317 = vsel %vm285, 1, 0
        %v318 = vsel %vm286, 1, 0
        %v319 = vsel %vm287, 1, 0
        %v320 = vsel %vm288, 1, 0
        %v321 = vsel %vm289, 1, 0
        %v322 = vsel %vm290, 1, 0
        %v323 = vsel %vm291, 1, 0
        %v324 = vsel %vm292, 1, 0
        %v325 = vsel %vm293, 1, 0
        %v326 = vsel %vm294, 1, 0
        %v327 = vsel %vm295, 1, 0
        %v328 = vsel %vm296, 1, 0
        %v329 = vsel %vm297, 1, 0
        %v330 = vsel %vm298, 1, 0
        %v331 = vsel %vm299, 1, 0
        %v332 = vsel %vm300, 1, 0
        %v333 = vsel %vm301, 1, 0
        %v334 = vsel %vm302, 1, 0
        %v335 = vsel %vm303, 1, 0
        %v336 = vsel %vm304, 1, 0
        %v337 = vsel %vm305, 1, 0
        %v338 = vsel %vm306, 1, 0
        %v339 = vcvt.s32.f32 %v307
        %v340 = vcvt.s32.f32 %v308
        %v341 = vcvt.s32.f32 %v309
        %v342 = vcvt.s32.f32 %v310
        %v343 = vcvt.s32.f32 %v311
        %v344 = vcvt.s32.f32 %v312
        %v345 = vcvt.s32.f32 %v313
        %v346 = vcvt.s32.f32 %v314
        %v347 = vcvt.s32.f32 %v315
        %v348 = vcvt.s32.f32 %v316
        %v349 = vcvt.s32.f32 %v317
        %v350 = vcvt.s32.f32 %v318
        %v351 = vcvt.s32.f32 %v319
        %v352 = vcvt.s32.f32 %v320
        %v353 = vcvt.s32.f32 %v321
        %v354 = vcvt.s32.f32 %v322
        %v355 = vcvt.s32.f32 %v323
        %v356 = vcvt.s32.f32 %v324
        %v357 = vcvt.s32.f32 %v325
        %v358 = vcvt.s32.f32 %v326
        %v359 = vcvt.s32.f32 %v327
        %v360 = vcvt.s32.f32 %v328
        %v361 = vcvt.s32.f32 %v329
        %v362 = vcvt.s32.f32 %v330
        %v363 = vcvt.s32.f32 %v331
        %v364 = vcvt.s32.f32 %v332
        %v365 = vcvt.s32.f32 %v333
        %v366 = vcvt.s32.f32 %v334
        %v367 = vcvt.s32.f32 %v335
        %v368 = vcvt.s32.f32 %v336
        %v369 = vcvt.s32.f32 %v337
        %v370 = vcvt.s32.f32 %v338
        %371 = vset.pattern.permute.xlu0 1
        %372 = vperm.xlu0 %371, %v145
        %v373 = vpop.permute.xlu0 %372
        %374 = vset.pattern.permute.xlu0 1
        %375 = vperm.xlu0 %374, %v146
        %v376 = vpop.permute.xlu0 %375
        %377 = vset.pattern.permute.xlu0 1
        %378 = vperm.xlu0 %377, %v147
        %v379 = vpop.permute.xlu0 %378
        %380 = vset.pattern.permute.xlu0 1
        %381 = vperm.xlu0 %380, %v148
        %v382 = vpop.permute.xlu0 %381
        %383 = vset.pattern.permute.xlu0 1
        %384 = vperm.xlu0 %383, %v149
        %v385 = vpop.permute.xlu0 %384
        %386 = vset.pattern.permute.xlu0 1
        %387 = vperm.xlu0 %386, %v150
        %v388 = vpop.permute.xlu0 %387
        %389 = vset.pattern.permute.xlu0 1
        %390 = vperm.xlu0 %389, %v151
        %v391 = vpop.permute.xlu0 %390
        %392 = vset.pattern.permute.xlu0 1
        %393 = vperm.xlu0 %392, %v152
        %v394 = vpop.permute.xlu0 %393
        %395 = vset.pattern.permute.xlu0 1
        %396 = vperm.xlu0 %395, %v153
        %v397 = vpop.permute.xlu0 %396
        %398 = vset.pattern.permute.xlu0 1
        %399 = vperm.xlu0 %398, %v154
        %v400 = vpop.permute.xlu0 %399
        %401 = vset.pattern.permute.xlu0 1
        %402 = vperm.xlu0 %401, %v155
        %v403 = vpop.permute.xlu0 %402
        %404 = vset.pattern.permute.xlu0 1
        %405 = vperm.xlu0 %404, %v156
        %v406 = vpop.permute.xlu0 %405
        %407 = vset.pattern.permute.xlu0 1
        %408 = vperm.xlu0 %407, %v157
        %v409 = vpop.permute.xlu0 %408
        %410 = vset.pattern.permute.xlu0 1
        %411 = vperm.xlu0 %410, %v158
        %v412 = vpop.permute.xlu0 %411
        %413 = vset.pattern.permute.xlu0 1
        %414 = vperm.xlu0 %413, %v159
        %v415 = vpop.permute.xlu0 %414
        %416 = vset.pattern.permute.xlu0 1
        %417 = vperm.xlu0 %416, %v160
        %v418 = vpop.permute.xlu0 %417
        %419 = vset.pattern.permute.xlu0 1
        %420 = vperm.xlu0 %419, %v161
        %v421 = vpop.permute.xlu0 %420
        %422 = vset.pattern.permute.xlu0 1
        %423 = vperm.xlu0 %422, %v162
        %v424 = vpop.permute.xlu0 %423
        %425 = vset.pattern.permute.xlu0 1
        %426 = vperm.xlu0 %425, %v163
        %v427 = vpop.permute.xlu0 %426
        %428 = vset.pattern.permute.xlu0 1
        %429 = vperm.xlu0 %428, %v164
        %v430 = vpop.permute.xlu0 %429
        %431 = vset.pattern.permute.xlu0 1
        %432 = vperm.xlu0 %431, %v165
        %v433 = vpop.permute.xlu0 %432
        %434 = vset.pattern.permute.xlu0 1
        %435 = vperm.xlu0 %434, %v166
        %v436 = vpop.permute.xlu0 %435
        %437 = vset.pattern.permute.xlu0 1
        %438 = vperm.xlu0 %437, %v167
        %v439 = vpop.permute.xlu0 %438
        %440 = vset.pattern.permute.xlu0 1
        %441 = vperm.xlu0 %440, %v168
        %v442 = vpop.permute.xlu0 %441
        %443 = vset.pattern.permute.xlu0 1
        %444 = vperm.xlu0 %443, %v169
        %v445 = vpop.permute.xlu0 %444
        %446 = vset.pattern.permute.xlu0 1
        %447 = vperm.xlu0 %446, %v170
        %v448 = vpop.permute.xlu0 %447
        %449 = vset.pattern.permute.xlu0 1
        %450 = vperm.xlu0 %449, %v171
        %v451 = vpop.permute.xlu0 %450
        %452 = vset.pattern.permute.xlu0 1
        %453 = vperm.xlu0 %452, %v172
        %v454 = vpop.permute.xlu0 %453
        %455 = vset.pattern.permute.xlu0 1
        %456 = vperm.xlu0 %455, %v173
        %v457 = vpop.permute.xlu0 %456
        %458 = vset.pattern.permute.xlu0 1
        %459 = vperm.xlu0 %458, %v174
        %v460 = vpop.permute.xlu0 %459
        %461 = vset.pattern.permute.xlu0 1
        %462 = vperm.xlu0 %461, %v175
        %v463 = vpop.permute.xlu0 %462
        %464 = vset.pattern.permute.xlu0 1
        %465 = vperm.xlu0 %464, %v176
        %v466 = vpop.permute.xlu0 %465
        %vm467 = vcmp.eq.s32.totalorder %v178, %v373
        %vm468 = vcmp.eq.s32.totalorder %v178, %v376
        %vm469 = vcmp.eq.s32.totalorder %v178, %v379
        %vm470 = vcmp.eq.s32.totalorder %v178, %v382
        %vm471 = vcmp.eq.s32.totalorder %v178, %v385
        %vm472 = vcmp.eq.s32.totalorder %v178, %v388
        %vm473 = vcmp.eq.s32.totalorder %v178, %v391
        %vm474 = vcmp.eq.s32.totalorder %v178, %v394
        %vm475 = vcmp.eq.s32.totalorder %v178, %v397
        %vm476 = vcmp.eq.s32.totalorder %v178, %v400
        %vm477 = vcmp.eq.s32.totalorder %v178, %v403
        %vm478 = vcmp.eq.s32.totalorder %v178, %v406
        %vm479 = vcmp.eq.s32.totalorder %v178, %v409
        %vm480 = vcmp.eq.s32.totalorder %v178, %v412
        %vm481 = vcmp.eq.s32.totalorder %v178, %v415
        %vm482 = vcmp.eq.s32.totalorder %v178, %v418
        %vm483 = vcmp.eq.s32.totalorder %v178, %v421
        %vm484 = vcmp.eq.s32.totalorder %v178, %v424
        %vm485 = vcmp.eq.s32.totalorder %v178, %v427
        %vm486 = vcmp.eq.s32.totalorder %v178, %v430
        %vm487 = vcmp.eq.s32.totalorder %v178, %v433
        %vm488 = vcmp.eq.s32.totalorder %v178, %v436
        %vm489 = vcmp.eq.s32.totalorder %v178, %v439
        %vm490 = vcmp.eq.s32.totalorder %v178, %v442
        %vm491 = vcmp.eq.s32.totalorder %v178, %v445
        %vm492 = vcmp.eq.s32.totalorder %v178, %v448
        %vm493 = vcmp.eq.s32.totalorder %v178, %v451
        %vm494 = vcmp.eq.s32.totalorder %v178, %v454
        %vm495 = vcmp.eq.s32.totalorder %v178, %v457
        %vm496 = vcmp.eq.s32.totalorder %v178, %v460
        %vm497 = vcmp.eq.s32.totalorder %v178, %v463
        %vm498 = vcmp.eq.s32.totalorder %v178, %v466
        %v499 = vadd.s32 %v145, 5
        %v500 = vadd.s32 %v146, 5
        %v501 = vadd.s32 %v147, 5
        %v502 = vadd.s32 %v148, 5
        %v503 = vadd.s32 %v149, 5
        %v504 = vadd.s32 %v150, 5
        %v505 = vadd.s32 %v151, 5
        %v506 = vadd.s32 %v152, 5
        %v507 = vadd.s32 %v153, 5
        %v508 = vadd.s32 %v154, 5
        %v509 = vadd.s32 %v155, 5
        %v510 = vadd.s32 %v156, 5
        %v511 = vadd.s32 %v157, 5
        %v512 = vadd.s32 %v158, 5
        %v513 = vadd.s32 %v159, 5
        %v514 = vadd.s32 %v160, 5
        %v515 = vadd.s32 %v161, 5
        %v516 = vadd.s32 %v162, 5
        %v517 = vadd.s32 %v163, 5
        %v518 = vadd.s32 %v164, 5
        %v519 = vadd.s32 %v165, 5
        %v520 = vadd.s32 %v166, 5
        %v521 = vadd.s32 %v167, 5
        %v522 = vadd.s32 %v168, 5
        %v523 = vadd.s32 %v169, 5
        %v524 = vadd.s32 %v170, 5
        %v525 = vadd.s32 %v171, 5
        %v526 = vadd.s32 %v172, 5
        %v527 = vadd.s32 %v173, 5
        %v528 = vadd.s32 %v174, 5
        %v529 = vadd.s32 %v175, 5
        %v530 = vadd.s32 %v176, 5
        %531 = vset.pattern.permute.xlu0 2
        %532 = vperm.xlu0 %531, %v499
        %v533 = vpop.permute.xlu0 %532
        %534 = vset.pattern.permute.xlu0 2
        %535 = vperm.xlu0 %534, %v500
        %v536 = vpop.permute.xlu0 %535
        %537 = vset.pattern.permute.xlu0 2
        %538 = vperm.xlu0 %537, %v501
        %v539 = vpop.permute.xlu0 %538
        %540 = vset.pattern.permute.xlu0 2
        %541 = vperm.xlu0 %540, %v502
        %v542 = vpop.permute.xlu0 %541
        %543 = vset.pattern.permute.xlu0 2
        %544 = vperm.xlu0 %543, %v503
        %v545 = vpop.permute.xlu0 %544
        %546 = vset.pattern.permute.xlu0 2
        %547 = vperm.xlu0 %546, %v504
        %v548 = vpop.permute.xlu0 %547
        %549 = vset.pattern.permute.xlu0 2
        %550 = vperm.xlu0 %549, %v505
        %v551 = vpop.permute.xlu0 %550
        %552 = vset.pattern.permute.xlu0 2
        %553 = vperm.xlu0 %552, %v506
        %v554 = vpop.permute.xlu0 %553
        %555 = vset.pattern.permute.xlu0 2
        %556 = vperm.xlu0 %555, %v507
        %v557 = vpop.permute.xlu0 %556
        %558 = vset.pattern.permute.xlu0 2
        %559 = vperm.xlu0 %558, %v508
        %v560 = vpop.permute.xlu0 %559
        %561 = vset.pattern.permute.xlu0 2
        %562 = vperm.xlu0 %561, %v509
        %v563 = vpop.permute.xlu0 %562
        %564 = vset.pattern.permute.xlu0 2
        %565 = vperm.xlu0 %564, %v510
        %v566 = vpop.permute.xlu0 %565
        %567 = vset.pattern.permute.xlu0 2
        %568 = vperm.xlu0 %567, %v511
        %v569 = vpop.permute.xlu0 %568
        %570 = vset.pattern.permute.xlu0 2
        %571 = vperm.xlu0 %570, %v512
        %v572 = vpop.permute.xlu0 %571
        %573 = vset.pattern.permute.xlu0 2
        %574 = vperm.xlu0 %573, %v513
        %v575 = vpop.permute.xlu0 %574
        %576 = vset.pattern.permute.xlu0 2
        %577 = vperm.xlu0 %576, %v514
        %v578 = vpop.permute.xlu0 %577
        %579 = vset.pattern.permute.xlu0 2
        %580 = vperm.xlu0 %579, %v515
        %v581 = vpop.permute.xlu0 %580
        %582 = vset.pattern.permute.xlu0 2
        %583 = vperm.xlu0 %582, %v516
        %v584 = vpop.permute.xlu0 %583
        %585 = vset.pattern.permute.xlu0 2
        %586 = vperm.xlu0 %585, %v517
        %v587 = vpop.permute.xlu0 %586
        %588 = vset.pattern.permute.xlu0 2
        %589 = vperm.xlu0 %588, %v518
        %v590 = vpop.permute.xlu0 %589
        %591 = vset.pattern.permute.xlu0 2
        %592 = vperm.xlu0 %591, %v519
        %v593 = vpop.permute.xlu0 %592
        %594 = vset.pattern.permute.xlu0 2
        %595 = vperm.xlu0 %594, %v520
        %v596 = vpop.permute.xlu0 %595
        %597 = vset.pattern.permute.xlu0 2
        %598 = vperm.xlu0 %597, %v521
        %v599 = vpop.permute.xlu0 %598
        %600 = vset.pattern.permute.xlu0 2
        %601 = vperm.xlu0 %600, %v522
        %v602 = vpop.permute.xlu0 %601
        %603 = vset.pattern.permute.xlu0 2
        %604 = vperm.xlu0 %603, %v523
        %v605 = vpop.permute.xlu0 %604
        %606 = vset.pattern.permute.xlu0 2
        %607 = vperm.xlu0 %606, %v524
        %v608 = vpop.permute.xlu0 %607
        %609 = vset.pattern.permute.xlu0 2
        %610 = vperm.xlu0 %609, %v525
        %v611 = vpop.permute.xlu0 %610
        %612 = vset.pattern.permute.xlu0 2
        %613 = vperm.xlu0 %612, %v526
        %v614 = vpop.permute.xlu0 %613
        %615 = vset.pattern.permute.xlu0 2
        %616 = vperm.xlu0 %615, %v527
        %v617 = vpop.permute.xlu0 %616
        %618 = vset.pattern.permute.xlu0 2
        %619 = vperm.xlu0 %618, %v528
        %v620 = vpop.permute.xlu0 %619
        %621 = vset.pattern.permute.xlu0 2
        %622 = vperm.xlu0 %621, %v529
        %v623 = vpop.permute.xlu0 %622
        %624 = vset.pattern.permute.xlu0 2
        %625 = vperm.xlu0 %624, %v530
        %v626 = vpop.permute.xlu0 %625
        %vm627 = vcmp.eq.s32.totalorder %v178, %v533
        %vm628 = vcmp.eq.s32.totalorder %v178, %v536
        %vm629 = vcmp.eq.s32.totalorder %v178, %v539
        %vm630 = vcmp.eq.s32.totalorder %v178, %v542
        %vm631 = vcmp.eq.s32.totalorder %v178, %v545
        %vm632 = vcmp.eq.s32.totalorder %v178, %v548
        %vm633 = vcmp.eq.s32.totalorder %v178, %v551
        %vm634 = vcmp.eq.s32.totalorder %v178, %v554
        %vm635 = vcmp.eq.s32.totalorder %v178, %v557
        %vm636 = vcmp.eq.s32.totalorder %v178, %v560
        %vm637 = vcmp.eq.s32.totalorder %v178, %v563
        %vm638 = vcmp.eq.s32.totalorder %v178, %v566
        %vm639 = vcmp.eq.s32.totalorder %v178, %v569
        %vm640 = vcmp.eq.s32.totalorder %v178, %v572
        %vm641 = vcmp.eq.s32.totalorder %v178, %v575
        %vm642 = vcmp.eq.s32.totalorder %v178, %v578
        %vm643 = vcmp.eq.s32.totalorder %v178, %v581
        %vm644 = vcmp.eq.s32.totalorder %v178, %v584
        %vm645 = vcmp.eq.s32.totalorder %v178, %v587
        %vm646 = vcmp.eq.s32.totalorder %v178, %v590
        %vm647 = vcmp.eq.s32.totalorder %v178, %v593
        %vm648 = vcmp.eq.s32.totalorder %v178, %v596
        %vm649 = vcmp.eq.s32.totalorder %v178, %v599
        %vm650 = vcmp.eq.s32.totalorder %v178, %v602
        %vm651 = vcmp.eq.s32.totalorder %v178, %v605
        %vm652 = vcmp.eq.s32.totalorder %v178, %v608
        %vm653 = vcmp.eq.s32.totalorder %v178, %v611
        %vm654 = vcmp.eq.s32.totalorder %v178, %v614
        %vm655 = vcmp.eq.s32.totalorder %v178, %v617
        %vm656 = vcmp.eq.s32.totalorder %v178, %v620
        %vm657 = vcmp.eq.s32.totalorder %v178, %v623
        %vm658 = vcmp.eq.s32.totalorder %v178, %v626
        %vm659 = vmor %vm467, %vm627
        %vm660 = vmor %vm468, %vm628
        %vm661 = vmor %vm469, %vm629
        %vm662 = vmor %vm470, %vm630
        %vm663 = vmor %vm471, %vm631
        %vm664 = vmor %vm472, %vm632
        %vm665 = vmor %vm473, %vm633
        %vm666 = vmor %vm474, %vm634
        %vm667 = vmor %vm475, %vm635
        %vm668 = vmor %vm476, %vm636
        %vm669 = vmor %vm477, %vm637
        %vm670 = vmor %vm478, %vm638
        %vm671 = vmor %vm479, %vm639
        %vm672 = vmor %vm480, %vm640
        %vm673 = vmor %vm481, %vm641
        %vm674 = vmor %vm482, %vm642
        %vm675 = vmor %vm483, %vm643
        %vm676 = vmor %vm484, %vm644
        %vm677 = vmor %vm485, %vm645
        %vm678 = vmor %vm486, %vm646
        %vm679 = vmor %vm487, %vm647
        %vm680 = vmor %vm488, %vm648
        %vm681 = vmor %vm489, %vm649
        %vm682 = vmor %vm490, %vm650
        %vm683 = vmor %vm491, %vm651
        %vm684 = vmor %vm492, %vm652
        %vm685 = vmor %vm493, %vm653
        %vm686 = vmor %vm494, %vm654
        %vm687 = vmor %vm495, %vm655
        %vm688 = vmor %vm496, %vm656
        %vm689 = vmor %vm497, %vm657
        %vm690 = vmor %vm498, %vm658
        %v691 = vadd.s32 %v145, 17
        %v692 = vadd.s32 %v146, 17
        %v693 = vadd.s32 %v147, 17
        %v694 = vadd.s32 %v148, 17
        %v695 = vadd.s32 %v149, 17
        %v696 = vadd.s32 %v150, 17
        %v697 = vadd.s32 %v151, 17
        %v698 = vadd.s32 %v152, 17
        %v699 = vadd.s32 %v153, 17
        %v700 = vadd.s32 %v154, 17
        %v701 = vadd.s32 %v155, 17
        %v702 = vadd.s32 %v156, 17
        %v703 = vadd.s32 %v157, 17
        %v704 = vadd.s32 %v158, 17
        %v705 = vadd.s32 %v159, 17
        %v706 = vadd.s32 %v160, 17
        %v707 = vadd.s32 %v161, 17
        %v708 = vadd.s32 %v162, 17
        %v709 = vadd.s32 %v163, 17
        %v710 = vadd.s32 %v164, 17
        %v711 = vadd.s32 %v165, 17
        %v712 = vadd.s32 %v166, 17
        %v713 = vadd.s32 %v167, 17
        %v714 = vadd.s32 %v168, 17
        %v715 = vadd.s32 %v169, 17
        %v716 = vadd.s32 %v170, 17
        %v717 = vadd.s32 %v171, 17
        %v718 = vadd.s32 %v172, 17
        %v719 = vadd.s32 %v173, 17
        %v720 = vadd.s32 %v174, 17
        %v721 = vadd.s32 %v175, 17
        %v722 = vadd.s32 %v176, 17
        %723 = vset.pattern.permute.xlu0 3
        %724 = vperm.xlu0 %723, %v691
        %v725 = vpop.permute.xlu0 %724
        %726 = vset.pattern.permute.xlu0 3
        %727 = vperm.xlu0 %726, %v692
        %v728 = vpop.permute.xlu0 %727
        %729 = vset.pattern.permute.xlu0 3
        %730 = vperm.xlu0 %729, %v693
        %v731 = vpop.permute.xlu0 %730
        %732 = vset.pattern.permute.xlu0 3
        %733 = vperm.xlu0 %732, %v694
        %v734 = vpop.permute.xlu0 %733
        %735 = vset.pattern.permute.xlu0 3
        %736 = vperm.xlu0 %735, %v695
        %v737 = vpop.permute.xlu0 %736
        %738 = vset.pattern.permute.xlu0 3
        %739 = vperm.xlu0 %738, %v696
        %v740 = vpop.permute.xlu0 %739
        %741 = vset.pattern.permute.xlu0 3
        %742 = vperm.xlu0 %741, %v697
        %v743 = vpop.permute.xlu0 %742
        %744 = vset.pattern.permute.xlu0 3
        %745 = vperm.xlu0 %744, %v698
        %v746 = vpop.permute.xlu0 %745
        %747 = vset.pattern.permute.xlu0 3
        %748 = vperm.xlu0 %747, %v699
        %v749 = vpop.permute.xlu0 %748
        %750 = vset.pattern.permute.xlu0 3
        %751 = vperm.xlu0 %750, %v700
        %v752 = vpop.permute.xlu0 %751
        %753 = vset.pattern.permute.xlu0 3
        %754 = vperm.xlu0 %753, %v701
        %v755 = vpop.permute.xlu0 %754
        %756 = vset.pattern.permute.xlu0 3
        %757 = vperm.xlu0 %756, %v702
        %v758 = vpop.permute.xlu0 %757
        %759 = vset.pattern.permute.xlu0 3
        %760 = vperm.xlu0 %759, %v703
        %v761 = vpop.permute.xlu0 %760
        %762 = vset.pattern.permute.xlu0 3
        %763 = vperm.xlu0 %762, %v704
        %v764 = vpop.permute.xlu0 %763
        %765 = vset.pattern.permute.xlu0 3
        %766 = vperm.xlu0 %765, %v705
        %v767 = vpop.permute.xlu0 %766
        %768 = vset.pattern.permute.xlu0 3
        %769 = vperm.xlu0 %768, %v706
        %v770 = vpop.permute.xlu0 %769
        %771 = vset.pattern.permute.xlu0 3
        %772 = vperm.xlu0 %771, %v707
        %v773 = vpop.permute.xlu0 %772
        %774 = vset.pattern.permute.xlu0 3
        %775 = vperm.xlu0 %774, %v708
        %v776 = vpop.permute.xlu0 %775
        %777 = vset.pattern.permute.xlu0 3
        %778 = vperm.xlu0 %777, %v709
        %v779 = vpop.permute.xlu0 %778
        %780 = vset.pattern.permute.xlu0 3
        %781 = vperm.xlu0 %780, %v710
        %v782 = vpop.permute.xlu0 %781
        %783 = vset.pattern.permute.xlu0 3
        %784 = vperm.xlu0 %783, %v711
        %v785 = vpop.permute.xlu0 %784
        %786 = vset.pattern.permute.xlu0 3
        %787 = vperm.xlu0 %786, %v712
        %v788 = vpop.permute.xlu0 %787
        %789 = vset.pattern.permute.xlu0 3
        %790 = vperm.xlu0 %789, %v713
        %v791 = vpop.permute.xlu0 %790
        %792 = vset.pattern.permute.xlu0 3
        %793 = vperm.xlu0 %792, %v714
        %v794 = vpop.permute.xlu0 %793
        %795 = vset.pattern.permute.xlu0 3
        %796 = vperm.xlu0 %795, %v715
        %v797 = vpop.permute.xlu0 %796
        %798 = vset.pattern.permute.xlu0 3
        %799 = vperm.xlu0 %798, %v716
        %v800 = vpop.permute.xlu0 %799
        %801 = vset.pattern.permute.xlu0 3
        %802 = vperm.xlu0 %801, %v717
        %v803 = vpop.permute.xlu0 %802
        %804 = vset.pattern.permute.xlu0 3
        %805 = vperm.xlu0 %804, %v718
        %v806 = vpop.permute.xlu0 %805
        %807 = vset.pattern.permute.xlu0 3
        %808 = vperm.xlu0 %807, %v719
        %v809 = vpop.permute.xlu0 %808
        %810 = vset.pattern.permute.xlu0 3
        %811 = vperm.xlu0 %810, %v720
        %v812 = vpop.permute.xlu0 %811
        %813 = vset.pattern.permute.xlu0 3
        %814 = vperm.xlu0 %813, %v721
        %v815 = vpop.permute.xlu0 %814
        %816 = vset.pattern.permute.xlu0 3
        %817 = vperm.xlu0 %816, %v722
        %v818 = vpop.permute.xlu0 %817
        %vm819 = vcmp.eq.s32.totalorder %v178, %v725
        %vm820 = vcmp.eq.s32.totalorder %v178, %v728
        %vm821 = vcmp.eq.s32.totalorder %v178, %v731
        %vm822 = vcmp.eq.s32.totalorder %v178, %v734
        %vm823 = vcmp.eq.s32.totalorder %v178, %v737
        %vm824 = vcmp.eq.s32.totalorder %v178, %v740
        %vm825 = vcmp.eq.s32.totalorder %v178, %v743
        %vm826 = vcmp.eq.s32.totalorder %v178, %v746
        %vm827 = vcmp.eq.s32.totalorder %v178, %v749
        %vm828 = vcmp.eq.s32.totalorder %v178, %v752
        %vm829 = vcmp.eq.s32.totalorder %v178, %v755
        %vm830 = vcmp.eq.s32.totalorder %v178, %v758
        %vm831 = vcmp.eq.s32.totalorder %v178, %v761
        %vm832 = vcmp.eq.s32.totalorder %v178, %v764
        %vm833 = vcmp.eq.s32.totalorder %v178, %v767
        %vm834 = vcmp.eq.s32.totalorder %v178, %v770
        %vm835 = vcmp.eq.s32.totalorder %v178, %v773
        %vm836 = vcmp.eq.s32.totalorder %v178, %v776
        %vm837 = vcmp.eq.s32.totalorder %v178, %v779
        %vm838 = vcmp.eq.s32.totalorder %v178, %v782
        %vm839 = vcmp.eq.s32.totalorder %v178, %v785
        %vm840 = vcmp.eq.s32.totalorder %v178, %v788
        %vm841 = vcmp.eq.s32.totalorder %v178, %v791
        %vm842 = vcmp.eq.s32.totalorder %v178, %v794
        %vm843 = vcmp.eq.s32.totalorder %v178, %v797
        %vm844 = vcmp.eq.s32.totalorder %v178, %v800
        %vm845 = vcmp.eq.s32.totalorder %v178, %v803
        %vm846 = vcmp.eq.s32.totalorder %v178, %v806
        %vm847 = vcmp.eq.s32.totalorder %v178, %v809
        %vm848 = vcmp.eq.s32.totalorder %v178, %v812
        %vm849 = vcmp.eq.s32.totalorder %v178, %v815
        %vm850 = vcmp.eq.s32.totalorder %v178, %v818
        %vm851 = vmor %vm659, %vm819
        %vm852 = vmor %vm660, %vm820
        %vm853 = vmor %vm661, %vm821
        %vm854 = vmor %vm662, %vm822
        %vm855 = vmor %vm663, %vm823
        %vm856 = vmor %vm664, %vm824
        %vm857 = vmor %vm665, %vm825
        %vm858 = vmor %vm666, %vm826
        %vm859 = vmor %vm667, %vm827
        %vm860 = vmor %vm668, %vm828
        %vm861 = vmor %vm669, %vm829
        %vm862 = vmor %vm670, %vm830
        %vm863 = vmor %vm671, %vm831
        %vm864 = vmor %vm672, %vm832
        %vm865 = vmor %vm673, %vm833
        %vm866 = vmor %vm674, %vm834
        %vm867 = vmor %vm675, %vm835
        %vm868 = vmor %vm676, %vm836
        %vm869 = vmor %vm677, %vm837
        %vm870 = vmor %vm678, %vm838
        %vm871 = vmor %vm679, %vm839
        %vm872 = vmor %vm680, %vm840
        %vm873 = vmor %vm681, %vm841
        %vm874 = vmor %vm682, %vm842
        %vm875 = vmor %vm683, %vm843
        %vm876 = vmor %vm684, %vm844
        %vm877 = vmor %vm685, %vm845
        %vm878 = vmor %vm686, %vm846
        %vm879 = vmor %vm687, %vm847
        %vm880 = vmor %vm688, %vm848
        %vm881 = vmor %vm689, %vm849
        %vm882 = vmor %vm690, %vm850
        %v883 = vadd.s32 %v145, 29
        %v884 = vadd.s32 %v146, 29
        %v885 = vadd.s32 %v147, 29
        %v886 = vadd.s32 %v148, 29
        %v887 = vadd.s32 %v149, 29
        %v888 = vadd.s32 %v150, 29
        %v889 = vadd.s32 %v151, 29
        %v890 = vadd.s32 %v152, 29
        %v891 = vadd.s32 %v153, 29
        %v892 = vadd.s32 %v154, 29
        %v893 = vadd.s32 %v155, 29
        %v894 = vadd.s32 %v156, 29
        %v895 = vadd.s32 %v157, 29
        %v896 = vadd.s32 %v158, 29
        %v897 = vadd.s32 %v159, 29
        %v898 = vadd.s32 %v160, 29
        %v899 = vadd.s32 %v161, 29
        %v900 = vadd.s32 %v162, 29
        %v901 = vadd.s32 %v163, 29
        %v902 = vadd.s32 %v164, 29
        %v903 = vadd.s32 %v165, 29
        %v904 = vadd.s32 %v166, 29
        %v905 = vadd.s32 %v167, 29
        %v906 = vadd.s32 %v168, 29
        %v907 = vadd.s32 %v169, 29
        %v908 = vadd.s32 %v170, 29
        %v909 = vadd.s32 %v171, 29
        %v910 = vadd.s32 %v172, 29
        %v911 = vadd.s32 %v173, 29
        %v912 = vadd.s32 %v174, 29
        %v913 = vadd.s32 %v175, 29
        %v914 = vadd.s32 %v176, 29
        %915 = vset.pattern.permute.xlu0 4
        %916 = vperm.xlu0 %915, %v883
        %v917 = vpop.permute.xlu0 %916
        %918 = vset.pattern.permute.xlu0 4
        %919 = vperm.xlu0 %918, %v884
        %v920 = vpop.permute.xlu0 %919
        %921 = vset.pattern.permute.xlu0 4
        %922 = vperm.xlu0 %921, %v885
        %v923 = vpop.permute.xlu0 %922
        %924 = vset.pattern.permute.xlu0 4
        %925 = vperm.xlu0 %924, %v886
        %v926 = vpop.permute.xlu0 %925
        %927 = vset.pattern.permute.xlu0 4
        %928 = vperm.xlu0 %927, %v887
        %v929 = vpop.permute.xlu0 %928
        %930 = vset.pattern.permute.xlu0 4
        %931 = vperm.xlu0 %930, %v888
        %v932 = vpop.permute.xlu0 %931
        %933 = vset.pattern.permute.xlu0 4
        %934 = vperm.xlu0 %933, %v889
        %v935 = vpop.permute.xlu0 %934
        %936 = vset.pattern.permute.xlu0 4
        %937 = vperm.xlu0 %936, %v890
        %v938 = vpop.permute.xlu0 %937
        %939 = vset.pattern.permute.xlu0 4
        %940 = vperm.xlu0 %939, %v891
        %v941 = vpop.permute.xlu0 %940
        %942 = vset.pattern.permute.xlu0 4
        %943 = vperm.xlu0 %942, %v892
        %v944 = vpop.permute.xlu0 %943
        %945 = vset.pattern.permute.xlu0 4
        %946 = vperm.xlu0 %945, %v893
        %v947 = vpop.permute.xlu0 %946
        %948 = vset.pattern.permute.xlu0 4
        %949 = vperm.xlu0 %948, %v894
        %v950 = vpop.permute.xlu0 %949
        %951 = vset.pattern.permute.xlu0 4
        %952 = vperm.xlu0 %951, %v895
        %v953 = vpop.permute.xlu0 %952
        %954 = vset.pattern.permute.xlu0 4
        %955 = vperm.xlu0 %954, %v896
        %v956 = vpop.permute.xlu0 %955
        %957 = vset.pattern.permute.xlu0 4
        %958 = vperm.xlu0 %957, %v897
        %v959 = vpop.permute.xlu0 %958
        %960 = vset.pattern.permute.xlu0 4
        %961 = vperm.xlu0 %960, %v898
        %v962 = vpop.permute.xlu0 %961
        %963 = vset.pattern.permute.xlu0 4
        %964 = vperm.xlu0 %963, %v899
        %v965 = vpop.permute.xlu0 %964
        %966 = vset.pattern.permute.xlu0 4
        %967 = vperm.xlu0 %966, %v900
        %v968 = vpop.permute.xlu0 %967
        %969 = vset.pattern.permute.xlu0 4
        %970 = vperm.xlu0 %969, %v901
        %v971 = vpop.permute.xlu0 %970
        %972 = vset.pattern.permute.xlu0 4
        %973 = vperm.xlu0 %972, %v902
        %v974 = vpop.permute.xlu0 %973
        %975 = vset.pattern.permute.xlu0 4
        %976 = vperm.xlu0 %975, %v903
        %v977 = vpop.permute.xlu0 %976
        %978 = vset.pattern.permute.xlu0 4
        %979 = vperm.xlu0 %978, %v904
        %v980 = vpop.permute.xlu0 %979
        %981 = vset.pattern.permute.xlu0 4
        %982 = vperm.xlu0 %981, %v905
        %v983 = vpop.permute.xlu0 %982
        %984 = vset.pattern.permute.xlu0 4
        %985 = vperm.xlu0 %984, %v906
        %v986 = vpop.permute.xlu0 %985
        %987 = vset.pattern.permute.xlu0 4
        %988 = vperm.xlu0 %987, %v907
        %v989 = vpop.permute.xlu0 %988
        %990 = vset.pattern.permute.xlu0 4
        %991 = vperm.xlu0 %990, %v908
        %v992 = vpop.permute.xlu0 %991
        %993 = vset.pattern.permute.xlu0 4
        %994 = vperm.xlu0 %993, %v909
        %v995 = vpop.permute.xlu0 %994
        %996 = vset.pattern.permute.xlu0 4
        %997 = vperm.xlu0 %996, %v910
        %v998 = vpop.permute.xlu0 %997
        %999 = vset.pattern.permute.xlu0 4
        %1000 = vperm.xlu0 %999, %v911
        %v1001 = vpop.permute.xlu0 %1000
        %1002 = vset.pattern.permute.xlu0 4
        %1003 = vperm.xlu0 %1002, %v912
        %v1004 = vpop.permute.xlu0 %1003
        %1005 = vset.pattern.permute.xlu0 4
        %1006 = vperm.xlu0 %1005, %v913
        %v1007 = vpop.permute.xlu0 %1006
        %1008 = vset.pattern.permute.xlu0 4
        %1009 = vperm.xlu0 %1008, %v914
        %v1010 = vpop.permute.xlu0 %1009
        %vm1011 = vcmp.eq.s32.totalorder %v178, %v917
        %vm1012 = vcmp.eq.s32.totalorder %v178, %v920
        %vm1013 = vcmp.eq.s32.totalorder %v178, %v923
        %vm1014 = vcmp.eq.s32.totalorder %v178, %v926
        %vm1015 = vcmp.eq.s32.totalorder %v178, %v929
        %vm1016 = vcmp.eq.s32.totalorder %v178, %v932
        %vm1017 = vcmp.eq.s32.totalorder %v178, %v935
        %vm1018 = vcmp.eq.s32.totalorder %v178, %v938
        %vm1019 = vcmp.eq.s32.totalorder %v178, %v941
        %vm1020 = vcmp.eq.s32.totalorder %v178, %v944
        %vm1021 = vcmp.eq.s32.totalorder %v178, %v947
        %vm1022 = vcmp.eq.s32.totalorder %v178, %v950
        %vm1023 = vcmp.eq.s32.totalorder %v178, %v953
        %vm1024 = vcmp.eq.s32.totalorder %v178, %v956
        %vm1025 = vcmp.eq.s32.totalorder %v178, %v959
        %vm1026 = vcmp.eq.s32.totalorder %v178, %v962
        %vm1027 = vcmp.eq.s32.totalorder %v178, %v965
        %vm1028 = vcmp.eq.s32.totalorder %v178, %v968
        %vm1029 = vcmp.eq.s32.totalorder %v178, %v971
        %vm1030 = vcmp.eq.s32.totalorder %v178, %v974
        %vm1031 = vcmp.eq.s32.totalorder %v178, %v977
        %vm1032 = vcmp.eq.s32.totalorder %v178, %v980
        %vm1033 = vcmp.eq.s32.totalorder %v178, %v983
        %vm1034 = vcmp.eq.s32.totalorder %v178, %v986
        %vm1035 = vcmp.eq.s32.totalorder %v178, %v989
        %vm1036 = vcmp.eq.s32.totalorder %v178, %v992
        %vm1037 = vcmp.eq.s32.totalorder %v178, %v995
        %vm1038 = vcmp.eq.s32.totalorder %v178, %v998
        %vm1039 = vcmp.eq.s32.totalorder %v178, %v1001
        %vm1040 = vcmp.eq.s32.totalorder %v178, %v1004
        %vm1041 = vcmp.eq.s32.totalorder %v178, %v1007
        %vm1042 = vcmp.eq.s32.totalorder %v178, %v1010
        %vm1043 = vmor %vm851, %vm1011
        %vm1044 = vmor %vm852, %vm1012
        %vm1045 = vmor %vm853, %vm1013
        %vm1046 = vmor %vm854, %vm1014
        %vm1047 = vmor %vm855, %vm1015
        %vm1048 = vmor %vm856, %vm1016
        %vm1049 = vmor %vm857, %vm1017
        %vm1050 = vmor %vm858, %vm1018
        %vm1051 = vmor %vm859, %vm1019
        %vm1052 = vmor %vm860, %vm1020
        %vm1053 = vmor %vm861, %vm1021
        %vm1054 = vmor %vm862, %vm1022
        %vm1055 = vmor %vm863, %vm1023
        %vm1056 = vmor %vm864, %vm1024
        %vm1057 = vmor %vm865, %vm1025
        %vm1058 = vmor %vm866, %vm1026
        %vm1059 = vmor %vm867, %vm1027
        %vm1060 = vmor %vm868, %vm1028
        %vm1061 = vmor %vm869, %vm1029
        %vm1062 = vmor %vm870, %vm1030
        %vm1063 = vmor %vm871, %vm1031
        %vm1064 = vmor %vm872, %vm1032
        %vm1065 = vmor %vm873, %vm1033
        %vm1066 = vmor %vm874, %vm1034
        %vm1067 = vmor %vm875, %vm1035
        %vm1068 = vmor %vm876, %vm1036
        %vm1069 = vmor %vm877, %vm1037
        %vm1070 = vmor %vm878, %vm1038
        %vm1071 = vmor %vm879, %vm1039
        %vm1072 = vmor %vm880, %vm1040
        %vm1073 = vmor %vm881, %vm1041
        %vm1074 = vmor %vm882, %vm1042
        %v1075 = vadd.s32 %v145, 39
        %v1076 = vadd.s32 %v146, 39
        %v1077 = vadd.s32 %v147, 39
        %v1078 = vadd.s32 %v148, 39
        %v1079 = vadd.s32 %v149, 39
        %v1080 = vadd.s32 %v150, 39
        %v1081 = vadd.s32 %v151, 39
        %v1082 = vadd.s32 %v152, 39
        %v1083 = vadd.s32 %v153, 39
        %v1084 = vadd.s32 %v154, 39
        %v1085 = vadd.s32 %v155, 39
        %v1086 = vadd.s32 %v156, 39
        %v1087 = vadd.s32 %v157, 39
        %v1088 = vadd.s32 %v158, 39
        %v1089 = vadd.s32 %v159, 39
        %v1090 = vadd.s32 %v160, 39
        %v1091 = vadd.s32 %v161, 39
        %v1092 = vadd.s32 %v162, 39
        %v1093 = vadd.s32 %v163, 39
        %v1094 = vadd.s32 %v164, 39
        %v1095 = vadd.s32 %v165, 39
        %v1096 = vadd.s32 %v166, 39
        %v1097 = vadd.s32 %v167, 39
        %v1098 = vadd.s32 %v168, 39
        %v1099 = vadd.s32 %v169, 39
        %v1100 = vadd.s32 %v170, 39
        %v1101 = vadd.s32 %v171, 39
        %v1102 = vadd.s32 %v172, 39
        %v1103 = vadd.s32 %v173, 39
        %v1104 = vadd.s32 %v174, 39
        %v1105 = vadd.s32 %v175, 39
        %v1106 = vadd.s32 %v176, 39
        %1107 = vset.pattern.permute.xlu0 5
        %1108 = vperm.xlu0 %1107, %v1075
        %v1109 = vpop.permute.xlu0 %1108
        %1110 = vset.pattern.permute.xlu0 5
        %1111 = vperm.xlu0 %1110, %v1076
        %v1112 = vpop.permute.xlu0 %1111
        %1113 = vset.pattern.permute.xlu0 5
        %1114 = vperm.xlu0 %1113, %v1077
        %v1115 = vpop.permute.xlu0 %1114
        %1116 = vset.pattern.permute.xlu0 5
        %1117 = vperm.xlu0 %1116, %v1078
        %v1118 = vpop.permute.xlu0 %1117
        %1119 = vset.pattern.permute.xlu0 5
        %1120 = vperm.xlu0 %1119, %v1079
        %v1121 = vpop.permute.xlu0 %1120
        %1122 = vset.pattern.permute.xlu0 5
        %1123 = vperm.xlu0 %1122, %v1080
        %v1124 = vpop.permute.xlu0 %1123
        %1125 = vset.pattern.permute.xlu0 5
        %1126 = vperm.xlu0 %1125, %v1081
        %v1127 = vpop.permute.xlu0 %1126
        %1128 = vset.pattern.permute.xlu0 5
        %1129 = vperm.xlu0 %1128, %v1082
        %v1130 = vpop.permute.xlu0 %1129
        %1131 = vset.pattern.permute.xlu0 5
        %1132 = vperm.xlu0 %1131, %v1083
        %v1133 = vpop.permute.xlu0 %1132
        %1134 = vset.pattern.permute.xlu0 5
        %1135 = vperm.xlu0 %1134, %v1084
        %v1136 = vpop.permute.xlu0 %1135
        %1137 = vset.pattern.permute.xlu0 5
        %1138 = vperm.xlu0 %1137, %v1085
        %v1139 = vpop.permute.xlu0 %1138
        %1140 = vset.pattern.permute.xlu0 5
        %1141 = vperm.xlu0 %1140, %v1086
        %v1142 = vpop.permute.xlu0 %1141
        %1143 = vset.pattern.permute.xlu0 5
        %1144 = vperm.xlu0 %1143, %v1087
        %v1145 = vpop.permute.xlu0 %1144
        %1146 = vset.pattern.permute.xlu0 5
        %1147 = vperm.xlu0 %1146, %v1088
        %v1148 = vpop.permute.xlu0 %1147
        %1149 = vset.pattern.permute.xlu0 5
        %1150 = vperm.xlu0 %1149, %v1089
        %v1151 = vpop.permute.xlu0 %1150
        %1152 = vset.pattern.permute.xlu0 5
        %1153 = vperm.xlu0 %1152, %v1090
        %v1154 = vpop.permute.xlu0 %1153
        %1155 = vset.pattern.permute.xlu0 5
        %1156 = vperm.xlu0 %1155, %v1091
        %v1157 = vpop.permute.xlu0 %1156
        %1158 = vset.pattern.permute.xlu0 5
        %1159 = vperm.xlu0 %1158, %v1092
        %v1160 = vpop.permute.xlu0 %1159
        %1161 = vset.pattern.permute.xlu0 5
        %1162 = vperm.xlu0 %1161, %v1093
        %v1163 = vpop.permute.xlu0 %1162
        %1164 = vset.pattern.permute.xlu0 5
        %1165 = vperm.xlu0 %1164, %v1094
        %v1166 = vpop.permute.xlu0 %1165
        %1167 = vset.pattern.permute.xlu0 5
        %1168 = vperm.xlu0 %1167, %v1095
        %v1169 = vpop.permute.xlu0 %1168
        %1170 = vset.pattern.permute.xlu0 5
        %1171 = vperm.xlu0 %1170, %v1096
        %v1172 = vpop.permute.xlu0 %1171
        %1173 = vset.pattern.permute.xlu0 5
        %1174 = vperm.xlu0 %1173, %v1097
        %v1175 = vpop.permute.xlu0 %1174
        %1176 = vset.pattern.permute.xlu0 5
        %1177 = vperm.xlu0 %1176, %v1098
        %v1178 = vpop.permute.xlu0 %1177
        %1179 = vset.pattern.permute.xlu0 5
        %1180 = vperm.xlu0 %1179, %v1099
        %v1181 = vpop.permute.xlu0 %1180
        %1182 = vset.pattern.permute.xlu0 5
        %1183 = vperm.xlu0 %1182, %v1100
        %v1184 = vpop.permute.xlu0 %1183
        %1185 = vset.pattern.permute.xlu0 5
        %1186 = vperm.xlu0 %1185, %v1101
        %v1187 = vpop.permute.xlu0 %1186
        %1188 = vset.pattern.permute.xlu0 5
        %1189 = vperm.xlu0 %1188, %v1102
        %v1190 = vpop.permute.xlu0 %1189
        %1191 = vset.pattern.permute.xlu0 5
        %1192 = vperm.xlu0 %1191, %v1103
        %v1193 = vpop.permute.xlu0 %1192
        %1194 = vset.pattern.permute.xlu0 5
        %1195 = vperm.xlu0 %1194, %v1104
        %v1196 = vpop.permute.xlu0 %1195
        %1197 = vset.pattern.permute.xlu0 5
        %1198 = vperm.xlu0 %1197, %v1105
        %v1199 = vpop.permute.xlu0 %1198
        %1200 = vset.pattern.permute.xlu0 5
        %1201 = vperm.xlu0 %1200, %v1106
        %v1202 = vpop.permute.xlu0 %1201
        %vm1203 = vcmp.eq.s32.totalorder %v178, %v1109
        %vm1204 = vcmp.eq.s32.totalorder %v178, %v1112
        %vm1205 = vcmp.eq.s32.totalorder %v178, %v1115
        %vm1206 = vcmp.eq.s32.totalorder %v178, %v1118
        %vm1207 = vcmp.eq.s32.totalorder %v178, %v1121
        %vm1208 = vcmp.eq.s32.totalorder %v178, %v1124
        %vm1209 = vcmp.eq.s32.totalorder %v178, %v1127
        %vm1210 = vcmp.eq.s32.totalorder %v178, %v1130
        %vm1211 = vcmp.eq.s32.totalorder %v178, %v1133
        %vm1212 = vcmp.eq.s32.totalorder %v178, %v1136
        %vm1213 = vcmp.eq.s32.totalorder %v178, %v1139
        %vm1214 = vcmp.eq.s32.totalorder %v178, %v1142
        %vm1215 = vcmp.eq.s32.totalorder %v178, %v1145
        %vm1216 = vcmp.eq.s32.totalorder %v178, %v1148
        %vm1217 = vcmp.eq.s32.totalorder %v178, %v1151
        %vm1218 = vcmp.eq.s32.totalorder %v178, %v1154
        %vm1219 = vcmp.eq.s32.totalorder %v178, %v1157
        %vm1220 = vcmp.eq.s32.totalorder %v178, %v1160
        %vm1221 = vcmp.eq.s32.totalorder %v178, %v1163
        %vm1222 = vcmp.eq.s32.totalorder %v178, %v1166
        %vm1223 = vcmp.eq.s32.totalorder %v178, %v1169
        %vm1224 = vcmp.eq.s32.totalorder %v178, %v1172
        %vm1225 = vcmp.eq.s32.totalorder %v178, %v1175
        %vm1226 = vcmp.eq.s32.totalorder %v178, %v1178
        %vm1227 = vcmp.eq.s32.totalorder %v178, %v1181
        %vm1228 = vcmp.eq.s32.totalorder %v178, %v1184
        %vm1229 = vcmp.eq.s32.totalorder %v178, %v1187
        %vm1230 = vcmp.eq.s32.totalorder %v178, %v1190
        %vm1231 = vcmp.eq.s32.totalorder %v178, %v1193
        %vm1232 = vcmp.eq.s32.totalorder %v178, %v1196
        %vm1233 = vcmp.eq.s32.totalorder %v178, %v1199
        %vm1234 = vcmp.eq.s32.totalorder %v178, %v1202
        %vm1235 = vmor %vm1043, %vm1203
        %vm1236 = vmor %vm1044, %vm1204
        %vm1237 = vmor %vm1045, %vm1205
        %vm1238 = vmor %vm1046, %vm1206
        %vm1239 = vmor %vm1047, %vm1207
        %vm1240 = vmor %vm1048, %vm1208
        %vm1241 = vmor %vm1049, %vm1209
        %vm1242 = vmor %vm1050, %vm1210
        %vm1243 = vmor %vm1051, %vm1211
        %vm1244 = vmor %vm1052, %vm1212
        %vm1245 = vmor %vm1053, %vm1213
        %vm1246 = vmor %vm1054, %vm1214
        %vm1247 = vmor %vm1055, %vm1215
        %vm1248 = vmor %vm1056, %vm1216
        %vm1249 = vmor %vm1057, %vm1217
        %vm1250 = vmor %vm1058, %vm1218
        %vm1251 = vmor %vm1059, %vm1219
        %vm1252 = vmor %vm1060, %vm1220
        %vm1253 = vmor %vm1061, %vm1221
        %vm1254 = vmor %vm1062, %vm1222
        %vm1255 = vmor %vm1063, %vm1223
        %vm1256 = vmor %vm1064, %vm1224
        %vm1257 = vmor %vm1065, %vm1225
        %vm1258 = vmor %vm1066, %vm1226
        %vm1259 = vmor %vm1067, %vm1227
        %vm1260 = vmor %vm1068, %vm1228
        %vm1261 = vmor %vm1069, %vm1229
        %vm1262 = vmor %vm1070, %vm1230
        %vm1263 = vmor %vm1071, %vm1231
        %vm1264 = vmor %vm1072, %vm1232
        %vm1265 = vmor %vm1073, %vm1233
        %vm1266 = vmor %vm1074, %vm1234
        %v1267 = vadd.s32 %v145, 45
        %v1268 = vadd.s32 %v146, 45
        %v1269 = vadd.s32 %v147, 45
        %v1270 = vadd.s32 %v148, 45
        %v1271 = vadd.s32 %v149, 45
        %v1272 = vadd.s32 %v150, 45
        %v1273 = vadd.s32 %v151, 45
        %v1274 = vadd.s32 %v152, 45
        %v1275 = vadd.s32 %v153, 45
        %v1276 = vadd.s32 %v154, 45
        %v1277 = vadd.s32 %v155, 45
        %v1278 = vadd.s32 %v156, 45
        %v1279 = vadd.s32 %v157, 45
        %v1280 = vadd.s32 %v158, 45
        %v1281 = vadd.s32 %v159, 45
        %v1282 = vadd.s32 %v160, 45
        %v1283 = vadd.s32 %v161, 45
        %v1284 = vadd.s32 %v162, 45
        %v1285 = vadd.s32 %v163, 45
        %v1286 = vadd.s32 %v164, 45
        %v1287 = vadd.s32 %v165, 45
        %v1288 = vadd.s32 %v166, 45
        %v1289 = vadd.s32 %v167, 45
        %v1290 = vadd.s32 %v168, 45
        %v1291 = vadd.s32 %v169, 45
        %v1292 = vadd.s32 %v170, 45
        %v1293 = vadd.s32 %v171, 45
        %v1294 = vadd.s32 %v172, 45
        %v1295 = vadd.s32 %v173, 45
        %v1296 = vadd.s32 %v174, 45
        %v1297 = vadd.s32 %v175, 45
        %v1298 = vadd.s32 %v176, 45
        %1299 = vset.pattern.permute.xlu0 6
        %1300 = vperm.xlu0 %1299, %v1267
        %v1301 = vpop.permute.xlu0 %1300
        %1302 = vset.pattern.permute.xlu0 6
        %1303 = vperm.xlu0 %1302, %v1268
        %v1304 = vpop.permute.xlu0 %1303
        %1305 = vset.pattern.permute.xlu0 6
        %1306 = vperm.xlu0 %1305, %v1269
        %v1307 = vpop.permute.xlu0 %1306
        %1308 = vset.pattern.permute.xlu0 6
        %1309 = vperm.xlu0 %1308, %v1270
        %v1310 = vpop.permute.xlu0 %1309
        %1311 = vset.pattern.permute.xlu0 6
        %1312 = vperm.xlu0 %1311, %v1271
        %v1313 = vpop.permute.xlu0 %1312
        %1314 = vset.pattern.permute.xlu0 6
        %1315 = vperm.xlu0 %1314, %v1272
        %v1316 = vpop.permute.xlu0 %1315
        %1317 = vset.pattern.permute.xlu0 6
        %1318 = vperm.xlu0 %1317, %v1273
        %v1319 = vpop.permute.xlu0 %1318
        %1320 = vset.pattern.permute.xlu0 6
        %1321 = vperm.xlu0 %1320, %v1274
        %v1322 = vpop.permute.xlu0 %1321
        %1323 = vset.pattern.permute.xlu0 6
        %1324 = vperm.xlu0 %1323, %v1275
        %v1325 = vpop.permute.xlu0 %1324
        %1326 = vset.pattern.permute.xlu0 6
        %1327 = vperm.xlu0 %1326, %v1276
        %v1328 = vpop.permute.xlu0 %1327
        %1329 = vset.pattern.permute.xlu0 6
        %1330 = vperm.xlu0 %1329, %v1277
        %v1331 = vpop.permute.xlu0 %1330
        %1332 = vset.pattern.permute.xlu0 6
        %1333 = vperm.xlu0 %1332, %v1278
        %v1334 = vpop.permute.xlu0 %1333
        %1335 = vset.pattern.permute.xlu0 6
        %1336 = vperm.xlu0 %1335, %v1279
        %v1337 = vpop.permute.xlu0 %1336
        %1338 = vset.pattern.permute.xlu0 6
        %1339 = vperm.xlu0 %1338, %v1280
        %v1340 = vpop.permute.xlu0 %1339
        %1341 = vset.pattern.permute.xlu0 6
        %1342 = vperm.xlu0 %1341, %v1281
        %v1343 = vpop.permute.xlu0 %1342
        %1344 = vset.pattern.permute.xlu0 6
        %1345 = vperm.xlu0 %1344, %v1282
        %v1346 = vpop.permute.xlu0 %1345
        %1347 = vset.pattern.permute.xlu0 6
        %1348 = vperm.xlu0 %1347, %v1283
        %v1349 = vpop.permute.xlu0 %1348
        %1350 = vset.pattern.permute.xlu0 6
        %1351 = vperm.xlu0 %1350, %v1284
        %v1352 = vpop.permute.xlu0 %1351
        %1353 = vset.pattern.permute.xlu0 6
        %1354 = vperm.xlu0 %1353, %v1285
        %v1355 = vpop.permute.xlu0 %1354
        %1356 = vset.pattern.permute.xlu0 6
        %1357 = vperm.xlu0 %1356, %v1286
        %v1358 = vpop.permute.xlu0 %1357
        %1359 = vset.pattern.permute.xlu0 6
        %1360 = vperm.xlu0 %1359, %v1287
        %v1361 = vpop.permute.xlu0 %1360
        %1362 = vset.pattern.permute.xlu0 6
        %1363 = vperm.xlu0 %1362, %v1288
        %v1364 = vpop.permute.xlu0 %1363
        %1365 = vset.pattern.permute.xlu0 6
        %1366 = vperm.xlu0 %1365, %v1289
        %v1367 = vpop.permute.xlu0 %1366
        %1368 = vset.pattern.permute.xlu0 6
        %1369 = vperm.xlu0 %1368, %v1290
        %v1370 = vpop.permute.xlu0 %1369
        %1371 = vset.pattern.permute.xlu0 6
        %1372 = vperm.xlu0 %1371, %v1291
        %v1373 = vpop.permute.xlu0 %1372
        %1374 = vset.pattern.permute.xlu0 6
        %1375 = vperm.xlu0 %1374, %v1292
        %v1376 = vpop.permute.xlu0 %1375
        %1377 = vset.pattern.permute.xlu0 6
        %1378 = vperm.xlu0 %1377, %v1293
        %v1379 = vpop.permute.xlu0 %1378
        %1380 = vset.pattern.permute.xlu0 6
        %1381 = vperm.xlu0 %1380, %v1294
        %v1382 = vpop.permute.xlu0 %1381
        %1383 = vset.pattern.permute.xlu0 6
        %1384 = vperm.xlu0 %1383, %v1295
        %v1385 = vpop.permute.xlu0 %1384
        %1386 = vset.pattern.permute.xlu0 6
        %1387 = vperm.xlu0 %1386, %v1296
        %v1388 = vpop.permute.xlu0 %1387
        %1389 = vset.pattern.permute.xlu0 6
        %1390 = vperm.xlu0 %1389, %v1297
        %v1391 = vpop.permute.xlu0 %1390
        %1392 = vset.pattern.permute.xlu0 6
        %1393 = vperm.xlu0 %1392, %v1298
        %v1394 = vpop.permute.xlu0 %1393
        %vm1395 = vcmp.eq.s32.totalorder %v178, %v1301
        %vm1396 = vcmp.eq.s32.totalorder %v178, %v1304
        %vm1397 = vcmp.eq.s32.totalorder %v178, %v1307
        %vm1398 = vcmp.eq.s32.totalorder %v178, %v1310
        %vm1399 = vcmp.eq.s32.totalorder %v178, %v1313
        %vm1400 = vcmp.eq.s32.totalorder %v178, %v1316
        %vm1401 = vcmp.eq.s32.totalorder %v178, %v1319
        %vm1402 = vcmp.eq.s32.totalorder %v178, %v1322
        %vm1403 = vcmp.eq.s32.totalorder %v178, %v1325
        %vm1404 = vcmp.eq.s32.totalorder %v178, %v1328
        %vm1405 = vcmp.eq.s32.totalorder %v178, %v1331
        %vm1406 = vcmp.eq.s32.totalorder %v178, %v1334
        %vm1407 = vcmp.eq.s32.totalorder %v178, %v1337
        %vm1408 = vcmp.eq.s32.totalorder %v178, %v1340
        %vm1409 = vcmp.eq.s32.totalorder %v178, %v1343
        %vm1410 = vcmp.eq.s32.totalorder %v178, %v1346
        %vm1411 = vcmp.eq.s32.totalorder %v178, %v1349
        %vm1412 = vcmp.eq.s32.totalorder %v178, %v1352
        %vm1413 = vcmp.eq.s32.totalorder %v178, %v1355
        %vm1414 = vcmp.eq.s32.totalorder %v178, %v1358
        %vm1415 = vcmp.eq.s32.totalorder %v178, %v1361
        %vm1416 = vcmp.eq.s32.totalorder %v178, %v1364
        %vm1417 = vcmp.eq.s32.totalorder %v178, %v1367
        %vm1418 = vcmp.eq.s32.totalorder %v178, %v1370
        %vm1419 = vcmp.eq.s32.totalorder %v178, %v1373
        %vm1420 = vcmp.eq.s32.totalorder %v178, %v1376
        %vm1421 = vcmp.eq.s32.totalorder %v178, %v1379
        %vm1422 = vcmp.eq.s32.totalorder %v178, %v1382
        %vm1423 = vcmp.eq.s32.totalorder %v178, %v1385
        %vm1424 = vcmp.eq.s32.totalorder %v178, %v1388
        %vm1425 = vcmp.eq.s32.totalorder %v178, %v1391
        %vm1426 = vcmp.eq.s32.totalorder %v178, %v1394
        %vm1427 = vmor %vm1235, %vm1395
        %vm1428 = vmor %vm1236, %vm1396
        %vm1429 = vmor %vm1237, %vm1397
        %vm1430 = vmor %vm1238, %vm1398
        %vm1431 = vmor %vm1239, %vm1399
        %vm1432 = vmor %vm1240, %vm1400
        %vm1433 = vmor %vm1241, %vm1401
        %vm1434 = vmor %vm1242, %vm1402
        %vm1435 = vmor %vm1243, %vm1403
        %vm1436 = vmor %vm1244, %vm1404
        %vm1437 = vmor %vm1245, %vm1405
        %vm1438 = vmor %vm1246, %vm1406
        %vm1439 = vmor %vm1247, %vm1407
        %vm1440 = vmor %vm1248, %vm1408
        %vm1441 = vmor %vm1249, %vm1409
        %vm1442 = vmor %vm1250, %vm1410
        %vm1443 = vmor %vm1251, %vm1411
        %vm1444 = vmor %vm1252, %vm1412
        %vm1445 = vmor %vm1253, %vm1413
        %vm1446 = vmor %vm1254, %vm1414
        %vm1447 = vmor %vm1255, %vm1415
        %vm1448 = vmor %vm1256, %vm1416
        %vm1449 = vmor %vm1257, %vm1417
        %vm1450 = vmor %vm1258, %vm1418
        %vm1451 = vmor %vm1259, %vm1419
        %vm1452 = vmor %vm1260, %vm1420
        %vm1453 = vmor %vm1261, %vm1421
        %vm1454 = vmor %vm1262, %vm1422
        %vm1455 = vmor %vm1263, %vm1423
        %vm1456 = vmor %vm1264, %vm1424
        %vm1457 = vmor %vm1265, %vm1425
        %vm1458 = vmor %vm1266, %vm1426
        %v1459 = vadd.s32 %v145, 51
        %v1460 = vadd.s32 %v146, 51
        %v1461 = vadd.s32 %v147, 51
        %v1462 = vadd.s32 %v148, 51
        %v1463 = vadd.s32 %v149, 51
        %v1464 = vadd.s32 %v150, 51
        %v1465 = vadd.s32 %v151, 51
        %v1466 = vadd.s32 %v152, 51
        %v1467 = vadd.s32 %v153, 51
        %v1468 = vadd.s32 %v154, 51
        %v1469 = vadd.s32 %v155, 51
        %v1470 = vadd.s32 %v156, 51
        %v1471 = vadd.s32 %v157, 51
        %v1472 = vadd.s32 %v158, 51
        %v1473 = vadd.s32 %v159, 51
        %v1474 = vadd.s32 %v160, 51
        %v1475 = vadd.s32 %v161, 51
        %v1476 = vadd.s32 %v162, 51
        %v1477 = vadd.s32 %v163, 51
        %v1478 = vadd.s32 %v164, 51
        %v1479 = vadd.s32 %v165, 51
        %v1480 = vadd.s32 %v166, 51
        %v1481 = vadd.s32 %v167, 51
        %v1482 = vadd.s32 %v168, 51
        %v1483 = vadd.s32 %v169, 51
        %v1484 = vadd.s32 %v170, 51
        %v1485 = vadd.s32 %v171, 51
        %v1486 = vadd.s32 %v172, 51
        %v1487 = vadd.s32 %v173, 51
        %v1488 = vadd.s32 %v174, 51
        %v1489 = vadd.s32 %v175, 51
        %v1490 = vadd.s32 %v176, 51
        %1491 = vset.pattern.permute.xlu0 7
        %1492 = vperm.xlu0 %1491, %v1459
        %v1493 = vpop.permute.xlu0 %1492
        %1494 = vset.pattern.permute.xlu0 7
        %1495 = vperm.xlu0 %1494, %v1460
        %v1496 = vpop.permute.xlu0 %1495
        %1497 = vset.pattern.permute.xlu0 7
        %1498 = vperm.xlu0 %1497, %v1461
        %v1499 = vpop.permute.xlu0 %1498
        %1500 = vset.pattern.permute.xlu0 7
        %1501 = vperm.xlu0 %1500, %v1462
        %v1502 = vpop.permute.xlu0 %1501
        %1503 = vset.pattern.permute.xlu0 7
        %1504 = vperm.xlu0 %1503, %v1463
        %v1505 = vpop.permute.xlu0 %1504
        %1506 = vset.pattern.permute.xlu0 7
        %1507 = vperm.xlu0 %1506, %v1464
        %v1508 = vpop.permute.xlu0 %1507
        %1509 = vset.pattern.permute.xlu0 7
        %1510 = vperm.xlu0 %1509, %v1465
        %v1511 = vpop.permute.xlu0 %1510
        %1512 = vset.pattern.permute.xlu0 7
        %1513 = vperm.xlu0 %1512, %v1466
        %v1514 = vpop.permute.xlu0 %1513
        %1515 = vset.pattern.permute.xlu0 7
        %1516 = vperm.xlu0 %1515, %v1467
        %v1517 = vpop.permute.xlu0 %1516
        %1518 = vset.pattern.permute.xlu0 7
        %1519 = vperm.xlu0 %1518, %v1468
        %v1520 = vpop.permute.xlu0 %1519
        %1521 = vset.pattern.permute.xlu0 7
        %1522 = vperm.xlu0 %1521, %v1469
        %v1523 = vpop.permute.xlu0 %1522
        %1524 = vset.pattern.permute.xlu0 7
        %1525 = vperm.xlu0 %1524, %v1470
        %v1526 = vpop.permute.xlu0 %1525
        %1527 = vset.pattern.permute.xlu0 7
        %1528 = vperm.xlu0 %1527, %v1471
        %v1529 = vpop.permute.xlu0 %1528
        %1530 = vset.pattern.permute.xlu0 7
        %1531 = vperm.xlu0 %1530, %v1472
        %v1532 = vpop.permute.xlu0 %1531
        %1533 = vset.pattern.permute.xlu0 7
        %1534 = vperm.xlu0 %1533, %v1473
        %v1535 = vpop.permute.xlu0 %1534
        %1536 = vset.pattern.permute.xlu0 7
        %1537 = vperm.xlu0 %1536, %v1474
        %v1538 = vpop.permute.xlu0 %1537
        %1539 = vset.pattern.permute.xlu0 7
        %1540 = vperm.xlu0 %1539, %v1475
        %v1541 = vpop.permute.xlu0 %1540
        %1542 = vset.pattern.permute.xlu0 7
        %1543 = vperm.xlu0 %1542, %v1476
        %v1544 = vpop.permute.xlu0 %1543
        %1545 = vset.pattern.permute.xlu0 7
        %1546 = vperm.xlu0 %1545, %v1477
        %v1547 = vpop.permute.xlu0 %1546
        %1548 = vset.pattern.permute.xlu0 7
        %1549 = vperm.xlu0 %1548, %v1478
        %v1550 = vpop.permute.xlu0 %1549
        %1551 = vset.pattern.permute.xlu0 7
        %1552 = vperm.xlu0 %1551, %v1479
        %v1553 = vpop.permute.xlu0 %1552
        %1554 = vset.pattern.permute.xlu0 7
        %1555 = vperm.xlu0 %1554, %v1480
        %v1556 = vpop.permute.xlu0 %1555
        %1557 = vset.pattern.permute.xlu0 7
        %1558 = vperm.xlu0 %1557, %v1481
        %v1559 = vpop.permute.xlu0 %1558
        %1560 = vset.pattern.permute.xlu0 7
        %1561 = vperm.xlu0 %1560, %v1482
        %v1562 = vpop.permute.xlu0 %1561
        %1563 = vset.pattern.permute.xlu0 7
        %1564 = vperm.xlu0 %1563, %v1483
        %v1565 = vpop.permute.xlu0 %1564
        %1566 = vset.pattern.permute.xlu0 7
        %1567 = vperm.xlu0 %1566, %v1484
        %v1568 = vpop.permute.xlu0 %1567
        %1569 = vset.pattern.permute.xlu0 7
        %1570 = vperm.xlu0 %1569, %v1485
        %v1571 = vpop.permute.xlu0 %1570
        %1572 = vset.pattern.permute.xlu0 7
        %1573 = vperm.xlu0 %1572, %v1486
        %v1574 = vpop.permute.xlu0 %1573
        %1575 = vset.pattern.permute.xlu0 7
        %1576 = vperm.xlu0 %1575, %v1487
        %v1577 = vpop.permute.xlu0 %1576
        %1578 = vset.pattern.permute.xlu0 7
        %1579 = vperm.xlu0 %1578, %v1488
        %v1580 = vpop.permute.xlu0 %1579
        %1581 = vset.pattern.permute.xlu0 7
        %1582 = vperm.xlu0 %1581, %v1489
        %v1583 = vpop.permute.xlu0 %1582
        %1584 = vset.pattern.permute.xlu0 7
        %1585 = vperm.xlu0 %1584, %v1490
        %v1586 = vpop.permute.xlu0 %1585
        %vm1587 = vcmp.eq.s32.totalorder %v178, %v1493
        %vm1588 = vcmp.eq.s32.totalorder %v178, %v1496
        %vm1589 = vcmp.eq.s32.totalorder %v178, %v1499
        %vm1590 = vcmp.eq.s32.totalorder %v178, %v1502
        %vm1591 = vcmp.eq.s32.totalorder %v178, %v1505
        %vm1592 = vcmp.eq.s32.totalorder %v178, %v1508
        %vm1593 = vcmp.eq.s32.totalorder %v178, %v1511
        %vm1594 = vcmp.eq.s32.totalorder %v178, %v1514
        %vm1595 = vcmp.eq.s32.totalorder %v178, %v1517
        %vm1596 = vcmp.eq.s32.totalorder %v178, %v1520
        %vm1597 = vcmp.eq.s32.totalorder %v178, %v1523
        %vm1598 = vcmp.eq.s32.totalorder %v178, %v1526
        %vm1599 = vcmp.eq.s32.totalorder %v178, %v1529
        %vm1600 = vcmp.eq.s32.totalorder %v178, %v1532
        %vm1601 = vcmp.eq.s32.totalorder %v178, %v1535
        %vm1602 = vcmp.eq.s32.totalorder %v178, %v1538
        %vm1603 = vcmp.eq.s32.totalorder %v178, %v1541
        %vm1604 = vcmp.eq.s32.totalorder %v178, %v1544
        %vm1605 = vcmp.eq.s32.totalorder %v178, %v1547
        %vm1606 = vcmp.eq.s32.totalorder %v178, %v1550
        %vm1607 = vcmp.eq.s32.totalorder %v178, %v1553
        %vm1608 = vcmp.eq.s32.totalorder %v178, %v1556
        %vm1609 = vcmp.eq.s32.totalorder %v178, %v1559
        %vm1610 = vcmp.eq.s32.totalorder %v178, %v1562
        %vm1611 = vcmp.eq.s32.totalorder %v178, %v1565
        %vm1612 = vcmp.eq.s32.totalorder %v178, %v1568
        %vm1613 = vcmp.eq.s32.totalorder %v178, %v1571
        %vm1614 = vcmp.eq.s32.totalorder %v178, %v1574
        %vm1615 = vcmp.eq.s32.totalorder %v178, %v1577
        %vm1616 = vcmp.eq.s32.totalorder %v178, %v1580
        %vm1617 = vcmp.eq.s32.totalorder %v178, %v1583
        %vm1618 = vcmp.eq.s32.totalorder %v178, %v1586
        %vm1619 = vmor %vm1427, %vm1587
        %vm1620 = vmor %vm1428, %vm1588
        %vm1621 = vmor %vm1429, %vm1589
        %vm1622 = vmor %vm1430, %vm1590
        %vm1623 = vmor %vm1431, %vm1591
        %vm1624 = vmor %vm1432, %vm1592
        %vm1625 = vmor %vm1433, %vm1593
        %vm1626 = vmor %vm1434, %vm1594
        %vm1627 = vmor %vm1435, %vm1595
        %vm1628 = vmor %vm1436, %vm1596
        %vm1629 = vmor %vm1437, %vm1597
        %vm1630 = vmor %vm1438, %vm1598
        %vm1631 = vmor %vm1439, %vm1599
        %vm1632 = vmor %vm1440, %vm1600
        %vm1633 = vmor %vm1441, %vm1601
        %vm1634 = vmor %vm1442, %vm1602
        %vm1635 = vmor %vm1443, %vm1603
        %vm1636 = vmor %vm1444, %vm1604
        %vm1637 = vmor %vm1445, %vm1605
        %vm1638 = vmor %vm1446, %vm1606
        %vm1639 = vmor %vm1447, %vm1607
        %vm1640 = vmor %vm1448, %vm1608
        %vm1641 = vmor %vm1449, %vm1609
        %vm1642 = vmor %vm1450, %vm1610
        %vm1643 = vmor %vm1451, %vm1611
        %vm1644 = vmor %vm1452, %vm1612
        %vm1645 = vmor %vm1453, %vm1613
        %vm1646 = vmor %vm1454, %vm1614
        %vm1647 = vmor %vm1455, %vm1615
        %vm1648 = vmor %vm1456, %vm1616
        %vm1649 = vmor %vm1457, %vm1617
        %vm1650 = vmor %vm1458, %vm1618
        %v1651 = vadd.s32 %v145, 53
        %v1652 = vadd.s32 %v146, 53
        %v1653 = vadd.s32 %v147, 53
        %v1654 = vadd.s32 %v148, 53
        %v1655 = vadd.s32 %v149, 53
        %v1656 = vadd.s32 %v150, 53
        %v1657 = vadd.s32 %v151, 53
        %v1658 = vadd.s32 %v152, 53
        %v1659 = vadd.s32 %v153, 53
        %v1660 = vadd.s32 %v154, 53
        %v1661 = vadd.s32 %v155, 53
        %v1662 = vadd.s32 %v156, 53
        %v1663 = vadd.s32 %v157, 53
        %v1664 = vadd.s32 %v158, 53
        %v1665 = vadd.s32 %v159, 53
        %v1666 = vadd.s32 %v160, 53
        %v1667 = vadd.s32 %v161, 53
        %v1668 = vadd.s32 %v162, 53
        %v1669 = vadd.s32 %v163, 53
        %v1670 = vadd.s32 %v164, 53
        %v1671 = vadd.s32 %v165, 53
        %v1672 = vadd.s32 %v166, 53
        %v1673 = vadd.s32 %v167, 53
        %v1674 = vadd.s32 %v168, 53
        %v1675 = vadd.s32 %v169, 53
        %v1676 = vadd.s32 %v170, 53
        %v1677 = vadd.s32 %v171, 53
        %v1678 = vadd.s32 %v172, 53
        %v1679 = vadd.s32 %v173, 53
        %v1680 = vadd.s32 %v174, 53
        %v1681 = vadd.s32 %v175, 53
        %v1682 = vadd.s32 %v176, 53
        %1683 = vset.pattern.permute.xlu0 8
        %1684 = vperm.xlu0 %1683, %v1651
        %v1685 = vpop.permute.xlu0 %1684
        %1686 = vset.pattern.permute.xlu0 8
        %1687 = vperm.xlu0 %1686, %v1652
        %v1688 = vpop.permute.xlu0 %1687
        %1689 = vset.pattern.permute.xlu0 8
        %1690 = vperm.xlu0 %1689, %v1653
        %v1691 = vpop.permute.xlu0 %1690
        %1692 = vset.pattern.permute.xlu0 8
        %1693 = vperm.xlu0 %1692, %v1654
        %v1694 = vpop.permute.xlu0 %1693
        %1695 = vset.pattern.permute.xlu0 8
        %1696 = vperm.xlu0 %1695, %v1655
        %v1697 = vpop.permute.xlu0 %1696
        %1698 = vset.pattern.permute.xlu0 8
        %1699 = vperm.xlu0 %1698, %v1656
        %v1700 = vpop.permute.xlu0 %1699
        %1701 = vset.pattern.permute.xlu0 8
        %1702 = vperm.xlu0 %1701, %v1657
        %v1703 = vpop.permute.xlu0 %1702
        %1704 = vset.pattern.permute.xlu0 8
        %1705 = vperm.xlu0 %1704, %v1658
        %v1706 = vpop.permute.xlu0 %1705
        %1707 = vset.pattern.permute.xlu0 8
        %1708 = vperm.xlu0 %1707, %v1659
        %v1709 = vpop.permute.xlu0 %1708
        %1710 = vset.pattern.permute.xlu0 8
        %1711 = vperm.xlu0 %1710, %v1660
        %v1712 = vpop.permute.xlu0 %1711
        %1713 = vset.pattern.permute.xlu0 8
        %1714 = vperm.xlu0 %1713, %v1661
        %v1715 = vpop.permute.xlu0 %1714
        %1716 = vset.pattern.permute.xlu0 8
        %1717 = vperm.xlu0 %1716, %v1662
        %v1718 = vpop.permute.xlu0 %1717
        %1719 = vset.pattern.permute.xlu0 8
        %1720 = vperm.xlu0 %1719, %v1663
        %v1721 = vpop.permute.xlu0 %1720
        %1722 = vset.pattern.permute.xlu0 8
        %1723 = vperm.xlu0 %1722, %v1664
        %v1724 = vpop.permute.xlu0 %1723
        %1725 = vset.pattern.permute.xlu0 8
        %1726 = vperm.xlu0 %1725, %v1665
        %v1727 = vpop.permute.xlu0 %1726
        %1728 = vset.pattern.permute.xlu0 8
        %1729 = vperm.xlu0 %1728, %v1666
        %v1730 = vpop.permute.xlu0 %1729
        %1731 = vset.pattern.permute.xlu0 8
        %1732 = vperm.xlu0 %1731, %v1667
        %v1733 = vpop.permute.xlu0 %1732
        %1734 = vset.pattern.permute.xlu0 8
        %1735 = vperm.xlu0 %1734, %v1668
        %v1736 = vpop.permute.xlu0 %1735
        %1737 = vset.pattern.permute.xlu0 8
        %1738 = vperm.xlu0 %1737, %v1669
        %v1739 = vpop.permute.xlu0 %1738
        %1740 = vset.pattern.permute.xlu0 8
        %1741 = vperm.xlu0 %1740, %v1670
        %v1742 = vpop.permute.xlu0 %1741
        %1743 = vset.pattern.permute.xlu0 8
        %1744 = vperm.xlu0 %1743, %v1671
        %v1745 = vpop.permute.xlu0 %1744
        %1746 = vset.pattern.permute.xlu0 8
        %1747 = vperm.xlu0 %1746, %v1672
        %v1748 = vpop.permute.xlu0 %1747
        %1749 = vset.pattern.permute.xlu0 8
        %1750 = vperm.xlu0 %1749, %v1673
        %v1751 = vpop.permute.xlu0 %1750
        %1752 = vset.pattern.permute.xlu0 8
        %1753 = vperm.xlu0 %1752, %v1674
        %v1754 = vpop.permute.xlu0 %1753
        %1755 = vset.pattern.permute.xlu0 8
        %1756 = vperm.xlu0 %1755, %v1675
        %v1757 = vpop.permute.xlu0 %1756
        %1758 = vset.pattern.permute.xlu0 8
        %1759 = vperm.xlu0 %1758, %v1676
        %v1760 = vpop.permute.xlu0 %1759
        %1761 = vset.pattern.permute.xlu0 8
        %1762 = vperm.xlu0 %1761, %v1677
        %v1763 = vpop.permute.xlu0 %1762
        %1764 = vset.pattern.permute.xlu0 8
        %1765 = vperm.xlu0 %1764, %v1678
        %v1766 = vpop.permute.xlu0 %1765
        %1767 = vset.pattern.permute.xlu0 8
        %1768 = vperm.xlu0 %1767, %v1679
        %v1769 = vpop.permute.xlu0 %1768
        %1770 = vset.pattern.permute.xlu0 8
        %1771 = vperm.xlu0 %1770, %v1680
        %v1772 = vpop.permute.xlu0 %1771
        %1773 = vset.pattern.permute.xlu0 8
        %1774 = vperm.xlu0 %1773, %v1681
        %v1775 = vpop.permute.xlu0 %1774
        %1776 = vset.pattern.permute.xlu0 8
        %1777 = vperm.xlu0 %1776, %v1682
        %v1778 = vpop.permute.xlu0 %1777
        %vm1779 = vcmp.eq.s32.totalorder %v178, %v1685
        %vm1780 = vcmp.eq.s32.totalorder %v178, %v1688
        %vm1781 = vcmp.eq.s32.totalorder %v178, %v1691
        %vm1782 = vcmp.eq.s32.totalorder %v178, %v1694
        %vm1783 = vcmp.eq.s32.totalorder %v178, %v1697
        %vm1784 = vcmp.eq.s32.totalorder %v178, %v1700
        %vm1785 = vcmp.eq.s32.totalorder %v178, %v1703
        %vm1786 = vcmp.eq.s32.totalorder %v178, %v1706
        %vm1787 = vcmp.eq.s32.totalorder %v178, %v1709
        %vm1788 = vcmp.eq.s32.totalorder %v178, %v1712
        %vm1789 = vcmp.eq.s32.totalorder %v178, %v1715
        %vm1790 = vcmp.eq.s32.totalorder %v178, %v1718
        %vm1791 = vcmp.eq.s32.totalorder %v178, %v1721
        %vm1792 = vcmp.eq.s32.totalorder %v178, %v1724
        %vm1793 = vcmp.eq.s32.totalorder %v178, %v1727
        %vm1794 = vcmp.eq.s32.totalorder %v178, %v1730
        %vm1795 = vcmp.eq.s32.totalorder %v178, %v1733
        %vm1796 = vcmp.eq.s32.totalorder %v178, %v1736
        %vm1797 = vcmp.eq.s32.totalorder %v178, %v1739
        %vm1798 = vcmp.eq.s32.totalorder %v178, %v1742
        %vm1799 = vcmp.eq.s32.totalorder %v178, %v1745
        %vm1800 = vcmp.eq.s32.totalorder %v178, %v1748
        %vm1801 = vcmp.eq.s32.totalorder %v178, %v1751
        %vm1802 = vcmp.eq.s32.totalorder %v178, %v1754
        %vm1803 = vcmp.eq.s32.totalorder %v178, %v1757
        %vm1804 = vcmp.eq.s32.totalorder %v178, %v1760
        %vm1805 = vcmp.eq.s32.totalorder %v178, %v1763
        %vm1806 = vcmp.eq.s32.totalorder %v178, %v1766
        %vm1807 = vcmp.eq.s32.totalorder %v178, %v1769
        %vm1808 = vcmp.eq.s32.totalorder %v178, %v1772
        %vm1809 = vcmp.eq.s32.totalorder %v178, %v1775
        %vm1810 = vcmp.eq.s32.totalorder %v178, %v1778
        %vm1811 = vmor %vm1619, %vm1779
        %vm1812 = vmor %vm1620, %vm1780
        %vm1813 = vmor %vm1621, %vm1781
        %vm1814 = vmor %vm1622, %vm1782
        %vm1815 = vmor %vm1623, %vm1783
        %vm1816 = vmor %vm1624, %vm1784
        %vm1817 = vmor %vm1625, %vm1785
        %vm1818 = vmor %vm1626, %vm1786
        %vm1819 = vmor %vm1627, %vm1787
        %vm1820 = vmor %vm1628, %vm1788
        %vm1821 = vmor %vm1629, %vm1789
        %vm1822 = vmor %vm1630, %vm1790
        %vm1823 = vmor %vm1631, %vm1791
        %vm1824 = vmor %vm1632, %vm1792
        %vm1825 = vmor %vm1633, %vm1793
        %vm1826 = vmor %vm1634, %vm1794
        %vm1827 = vmor %vm1635, %vm1795
        %vm1828 = vmor %vm1636, %vm1796
        %vm1829 = vmor %vm1637, %vm1797
        %vm1830 = vmor %vm1638, %vm1798
        %vm1831 = vmor %vm1639, %vm1799
        %vm1832 = vmor %vm1640, %vm1800
        %vm1833 = vmor %vm1641, %vm1801
        %vm1834 = vmor %vm1642, %vm1802
        %vm1835 = vmor %vm1643, %vm1803
        %vm1836 = vmor %vm1644, %vm1804
        %vm1837 = vmor %vm1645, %vm1805
        %vm1838 = vmor %vm1646, %vm1806
        %vm1839 = vmor %vm1647, %vm1807
        %vm1840 = vmor %vm1648, %vm1808
        %vm1841 = vmor %vm1649, %vm1809
        %vm1842 = vmor %vm1650, %vm1810
        %v1843 = vsel %vm1811, 1, 0
        %v1844 = vsel %vm1812, 1, 0
        %v1845 = vsel %vm1813, 1, 0
        %v1846 = vsel %vm1814, 1, 0
        %v1847 = vsel %vm1815, 1, 0
        %v1848 = vsel %vm1816, 1, 0
        %v1849 = vsel %vm1817, 1, 0
        %v1850 = vsel %vm1818, 1, 0
        %v1851 = vsel %vm1819, 1, 0
        %v1852 = vsel %vm1820, 1, 0
        %v1853 = vsel %vm1821, 1, 0
        %v1854 = vsel %vm1822, 1, 0
        %v1855 = vsel %vm1823, 1, 0
        %v1856 = vsel %vm1824, 1, 0
        %v1857 = vsel %vm1825, 1, 0
        %v1858 = vsel %vm1826, 1, 0
        %v1859 = vsel %vm1827, 1, 0
        %v1860 = vsel %vm1828, 1, 0
        %v1861 = vsel %vm1829, 1, 0
        %v1862 = vsel %vm1830, 1, 0
        %v1863 = vsel %vm1831, 1, 0
        %v1864 = vsel %vm1832, 1, 0
        %v1865 = vsel %vm1833, 1, 0
        %v1866 = vsel %vm1834, 1, 0
        %v1867 = vsel %vm1835, 1, 0
        %v1868 = vsel %vm1836, 1, 0
        %v1869 = vsel %vm1837, 1, 0
        %v1870 = vsel %vm1838, 1, 0
        %v1871 = vsel %vm1839, 1, 0
        %v1872 = vsel %vm1840, 1, 0
        %v1873 = vsel %vm1841, 1, 0
        %v1874 = vsel %vm1842, 1, 0
        %v1875 = vcvt.s32.f32 %v1843
        %v1876 = vcvt.s32.f32 %v1844
        %v1877 = vcvt.s32.f32 %v1845
        %v1878 = vcvt.s32.f32 %v1846
        %v1879 = vcvt.s32.f32 %v1847
        %v1880 = vcvt.s32.f32 %v1848
        %v1881 = vcvt.s32.f32 %v1849
        %v1882 = vcvt.s32.f32 %v1850
        %v1883 = vcvt.s32.f32 %v1851
        %v1884 = vcvt.s32.f32 %v1852
        %v1885 = vcvt.s32.f32 %v1853
        %v1886 = vcvt.s32.f32 %v1854
        %v1887 = vcvt.s32.f32 %v1855
        %v1888 = vcvt.s32.f32 %v1856
        %v1889 = vcvt.s32.f32 %v1857
        %v1890 = vcvt.s32.f32 %v1858
        %v1891 = vcvt.s32.f32 %v1859
        %v1892 = vcvt.s32.f32 %v1860
        %v1893 = vcvt.s32.f32 %v1861
        %v1894 = vcvt.s32.f32 %v1862
        %v1895 = vcvt.s32.f32 %v1863
        %v1896 = vcvt.s32.f32 %v1864
        %v1897 = vcvt.s32.f32 %v1865
        %v1898 = vcvt.s32.f32 %v1866
        %v1899 = vcvt.s32.f32 %v1867
        %v1900 = vcvt.s32.f32 %v1868
        %v1901 = vcvt.s32.f32 %v1869
        %v1902 = vcvt.s32.f32 %v1870
        %v1903 = vcvt.s32.f32 %v1871
        %v1904 = vcvt.s32.f32 %v1872
        %v1905 = vcvt.s32.f32 %v1873
        %v1906 = vcvt.s32.f32 %v1874
        %v1907 = vld [vmem:[%s1] sm:$0xff]
        %v1908 = vld [vmem:[%s1 + $0x8] sm:$0xff]
        %v1909 = vld [vmem:[%s1 + $0x10] sm:$0xff]
        %v1910 = vld [vmem:[%s1 + $0x18] sm:$0xff]
        %v1911 = vld [vmem:[%s1 + $0x20] sm:$0xff]
        %v1912 = vld [vmem:[%s1 + $0x28] sm:$0xff]
        %v1913 = vld [vmem:[%s1 + $0x30] sm:$0xff]
        %v1914 = vld [vmem:[%s1 + $0x38] sm:$0xff]
        %v1915 = vld [vmem:[%s1 + $0x40] sm:$0xff]
        %v1916 = vld [vmem:[%s1 + $0x48] sm:$0xff]
        %v1917 = vld [vmem:[%s1 + $0x50] sm:$0xff]
        %v1918 = vld [vmem:[%s1 + $0x58] sm:$0xff]
        %v1919 = vld [vmem:[%s1 + $0x60] sm:$0xff]
        %v1920 = vld [vmem:[%s1 + $0x68] sm:$0xff]
        %v1921 = vld [vmem:[%s1 + $0x70] sm:$0xff]
        %v1922 = vld [vmem:[%s1 + $0x78] sm:$0xff]
        %v1923 = vld [vmem:[%s1 + $0x80] sm:$0xff]
        %v1924 = vld [vmem:[%s1 + $0x88] sm:$0xff]
        %v1925 = vld [vmem:[%s1 + $0x90] sm:$0xff]
        %v1926 = vld [vmem:[%s1 + $0x98] sm:$0xff]
        %v1927 = vld [vmem:[%s1 + $0xa0] sm:$0xff]
        %v1928 = vld [vmem:[%s1 + $0xa8] sm:$0xff]
        %v1929 = vld [vmem:[%s1 + $0xb0] sm:$0xff]
        %v1930 = vld [vmem:[%s1 + $0xb8] sm:$0xff]
        %v1931 = vld [vmem:[%s1 + $0xc0] sm:$0xff]
        %v1932 = vld [vmem:[%s1 + $0xc8] sm:$0xff]
        %v1933 = vld [vmem:[%s1 + $0xd0] sm:$0xff]
        %v1934 = vld [vmem:[%s1 + $0xd8] sm:$0xff]
        %v1935 = vld [vmem:[%s1 + $0xe0] sm:$0xff]
        %v1936 = vld [vmem:[%s1 + $0xe8] sm:$0xff]
        %v1937 = vld [vmem:[%s1 + $0xf0] sm:$0xff]
        %v1938 = vld [vmem:[%s1 + $0xf8] sm:$0xff]
        %1939 = vmatprep.subr.mxu0 0.0
        %1940 = vmatpush1.msra.mxu0 %v1923
        %1941 = vmatprep.subr.mxu0 0.0
        %1942 = vmatpush1.msra.mxu0 %v1924
        %1943 = vmatprep.subr.mxu0 0.0
        %1944 = vmatpush1.msra.mxu0 %v1925
        %1945 = vmatprep.subr.mxu0 0.0
        %1946 = vmatpush1.msra.mxu0 %v1926
        %1947 = vmatprep.subr.mxu0 0.0
        %1948 = vmatpush1.msra.mxu0 %v1927
        %1949 = vmatprep.subr.mxu0 0.0
        %1950 = vmatpush1.msra.mxu0 %v1928
        %1951 = vmatprep.subr.mxu0 0.0
        %1952 = vmatpush1.msra.mxu0 %v1929
        %1953 = vmatprep.subr.mxu0 0.0
        %1954 = vmatpush1.msra.mxu0 %v1930
        %1955 = vmatprep.subr.mxu0 0.0
        %1956 = vmatpush1.msra.mxu0 %v1931
        %1957 = vmatprep.subr.mxu0 0.0
        %1958 = vmatpush1.msra.mxu0 %v1932
        %1959 = vmatprep.subr.mxu0 0.0
        %1960 = vmatpush1.msra.mxu0 %v1933
        %1961 = vmatprep.subr.mxu0 0.0
        %1962 = vmatpush1.msra.mxu0 %v1934
        %1963 = vmatprep.subr.mxu0 0.0
        %1964 = vmatpush1.msra.mxu0 %v1935
        %1965 = vmatprep.subr.mxu0 0.0
        %1966 = vmatpush1.msra.mxu0 %v1936
        %1967 = vmatprep.subr.mxu0 0.0
        %1968 = vmatpush1.msra.mxu0 %v1937
        %1969 = vmatprep.subr.mxu0 0.0
        %1970 = vmatpush1.msra.mxu0 %v1938
        %1971 = vmatprep.subr.mxu0 0.0
        %1972 = vmatpush1.msra.mxu0 0.0
        %1973 = vmatprep.subr.mxu0 0.0
        %1974 = vmatpush1.msra.mxu0 0.0
        %1975 = vmatprep.subr.mxu0 0.0
        %1976 = vmatpush1.msra.mxu0 0.0
        %1977 = vmatprep.subr.mxu0 0.0
        %1978 = vmatpush1.msra.mxu0 0.0
        %1979 = vmatprep.subr.mxu0 0.0
        %1980 = vmatpush1.msra.mxu0 0.0
        %1981 = vmatprep.subr.mxu0 0.0
        %1982 = vmatpush1.msra.mxu0 0.0
        %1983 = vmatprep.subr.mxu0 0.0
        %1984 = vmatpush1.msra.mxu0 0.0
        %1985 = vmatprep.subr.mxu0 0.0
        %1986 = vmatpush1.msra.mxu0 0.0
        %1987 = vmatprep.subr.mxu0 0.0
        %1988 = vmatpush1.msra.mxu0 0.0
        %1989 = vmatprep.subr.mxu0 0.0
        %1990 = vmatpush1.msra.mxu0 0.0
        %1991 = vmatprep.subr.mxu0 0.0
        %1992 = vmatpush1.msra.mxu0 0.0
        %1993 = vmatprep.subr.mxu0 0.0
        %1994 = vmatpush1.msra.mxu0 0.0
        %1995 = vmatprep.subr.mxu0 0.0
        %1996 = vmatpush1.msra.mxu0 0.0
        %1997 = vmatprep.subr.mxu0 0.0
        %1998 = vmatpush1.msra.mxu0 0.0
        %1999 = vmatprep.subr.mxu0 0.0
        %2000 = vmatpush1.msra.mxu0 0.0
        %2001 = vmatprep.subr.mxu0 0.0
        %2002 = vmatpush1.msra.mxu0 0.0
        %2003 = vmatprep.mubr.f32.mxu0 0.0
        %2004 = vmatmul.mubr.f32.gmra.mrb[0].mxu0 %v1875
        %v2005 = vpop.f32.mrb[0].mxu0
        %v2006 = vadd.f32 0.0, %v2005
        %v2007 = vpop.f32.mrb[0].mxu0
        %2008 = vmatprep.mubr.f32.mxu0 0.0
        %2009 = vmatmul.mubr.f32.gmra.mrb[0].mxu0 %v1876
        %v2010 = vpop.f32.mrb[0].mxu0
        %v2011 = vadd.f32 0.0, %v2010
        %v2012 = vpop.f32.mrb[0].mxu0
        %2013 = vmatprep.mubr.f32.mxu0 0.0
        %2014 = vmatmul.mubr.f32.gmra.mrb[0].mxu0 %v1877
        %v2015 = vpop.f32.mrb[0].mxu0
        %v2016 = vadd.f32 0.0, %v2015
        %v2017 = vpop.f32.mrb[0].mxu0
        %2018 = vmatprep.mubr.f32.mxu0 0.0
        %2019 = vmatmul.mubr.f32.gmra.mrb[0].mxu0 %v1878
        %v2020 = vpop.f32.mrb[0].mxu0
        %v2021 = vadd.f32 0.0, %v2020
        %v2022 = vpop.f32.mrb[0].mxu0
        %2023 = vmatprep.mubr.f32.mxu0 0.0
        %2024 = vmatmul.mubr.f32.gmra.mrb[0].mxu0 %v1879
        %v2025 = vpop.f32.mrb[0].mxu0
        %v2026 = vadd.f32 0.0, %v2025
        %v2027 = vpop.f32.mrb[0].mxu0
        %2028 = vmatprep.mubr.f32.mxu0 0.0
        %2029 = vmatmul.mubr.f32.gmra.mrb[0].mxu0 %v1880
        %v2030 = vpop.f32.mrb[0].mxu0
        %v2031 = vadd.f32 0.0, %v2030
        %v2032 = vpop.f32.mrb[0].mxu0
        %2033 = vmatprep.mubr.f32.mxu0 0.0
        %2034 = vmatmul.mubr.f32.gmra.mrb[0].mxu0 %v1881
        %v2035 = vpop.f32.mrb[0].mxu0
        %v2036 = vadd.f32 0.0, %v2035
        %v2037 = vpop.f32.mrb[0].mxu0
        %2038 = vmatprep.mubr.f32.mxu0 0.0
        %2039 = vmatmul.mubr.f32.gmra.mrb[0].mxu0 %v1882
        %v2040 = vpop.f32.mrb[0].mxu0
        %v2041 = vadd.f32 0.0, %v2040
        %v2042 = vpop.f32.mrb[0].mxu0
        %2043 = vmatprep.mubr.f32.mxu0 0.0
        %2044 = vmatmul.mubr.f32.gmra.mrb[0].mxu0 %v1883
        %v2045 = vpop.f32.mrb[0].mxu0
        %v2046 = vadd.f32 0.0, %v2045
        %v2047 = vpop.f32.mrb[0].mxu0
        %2048 = vmatprep.mubr.f32.mxu0 0.0
        %2049 = vmatmul.mubr.f32.gmra.mrb[0].mxu0 %v1884
        %v2050 = vpop.f32.mrb[0].mxu0
        %v2051 = vadd.f32 0.0, %v2050
        %v2052 = vpop.f32.mrb[0].mxu0
        %2053 = vmatprep.mubr.f32.mxu0 0.0
        %2054 = vmatmul.mubr.f32.gmra.mrb[0].mxu0 %v1885
        %v2055 = vpop.f32.mrb[0].mxu0
        %v2056 = vadd.f32 0.0, %v2055
        %v2057 = vpop.f32.mrb[0].mxu0
        %2058 = vmatprep.mubr.f32.mxu0 0.0
        %2059 = vmatmul.mubr.f32.gmra.mrb[0].mxu0 %v1886
        %v2060 = vpop.f32.mrb[0].mxu0
        %v2061 = vadd.f32 0.0, %v2060
        %v2062 = vpop.f32.mrb[0].mxu0
        %2063 = vmatprep.mubr.f32.mxu0 0.0
        %2064 = vmatmul.mubr.f32.gmra.mrb[0].mxu0 %v1887
        %v2065 = vpop.f32.mrb[0].mxu0
        %v2066 = vadd.f32 0.0, %v2065
        %v2067 = vpop.f32.mrb[0].mxu0
        %2068 = vmatprep.mubr.f32.mxu0 0.0
        %2069 = vmatmul.mubr.f32.gmra.mrb[0].mxu0 %v1888
        %v2070 = vpop.f32.mrb[0].mxu0
        %v2071 = vadd.f32 0.0, %v2070
        %v2072 = vpop.f32.mrb[0].mxu0
        %2073 = vmatprep.mubr.f32.mxu0 0.0
        %2074 = vmatmul.mubr.f32.gmra.mrb[0].mxu0 %v1889
        %v2075 = vpop.f32.mrb[0].mxu0
        %v2076 = vadd.f32 0.0, %v2075
        %v2077 = vpop.f32.mrb[0].mxu0
        %2078 = vmatprep.mubr.f32.mxu0 0.0
        %2079 = vmatmul.mubr.f32.gmra.mrb[0].mxu0 %v1890
        %v2080 = vpop.f32.mrb[0].mxu0
        %v2081 = vadd.f32 0.0, %v2080
        %v2082 = vpop.f32.mrb[0].mxu0
        %2083 = vmatprep.mubr.f32.mxu0 0.0
        %2084 = vmatmul.mubr.f32.gmra.mrb[0].mxu0 %v1891
        %v2085 = vpop.f32.mrb[0].mxu0
        %v2086 = vadd.f32 0.0, %v2085
        %v2087 = vpop.f32.mrb[0].mxu0
        %2088 = vmatprep.mubr.f32.mxu0 0.0
        %2089 = vmatmul.mubr.f32.gmra.mrb[0].mxu0 %v1892
        %v2090 = vpop.f32.mrb[0].mxu0
        %v2091 = vadd.f32 0.0, %v2090
        %v2092 = vpop.f32.mrb[0].mxu0
        %2093 = vmatprep.mubr.f32.mxu0 0.0
        %2094 = vmatmul.mubr.f32.gmra.mrb[0].mxu0 %v1893
        %v2095 = vpop.f32.mrb[0].mxu0
        %v2096 = vadd.f32 0.0, %v2095
        %v2097 = vpop.f32.mrb[0].mxu0
        %2098 = vmatprep.mubr.f32.mxu0 0.0
        %2099 = vmatmul.mubr.f32.gmra.mrb[0].mxu0 %v1894
        %v2100 = vpop.f32.mrb[0].mxu0
        %v2101 = vadd.f32 0.0, %v2100
        %v2102 = vpop.f32.mrb[0].mxu0
        %2103 = vmatprep.mubr.f32.mxu0 0.0
        %2104 = vmatmul.mubr.f32.gmra.mrb[0].mxu0 %v1895
        %v2105 = vpop.f32.mrb[0].mxu0
        %v2106 = vadd.f32 0.0, %v2105
        %v2107 = vpop.f32.mrb[0].mxu0
        %2108 = vmatprep.mubr.f32.mxu0 0.0
        %2109 = vmatmul.mubr.f32.gmra.mrb[0].mxu0 %v1896
        %v2110 = vpop.f32.mrb[0].mxu0
        %v2111 = vadd.f32 0.0, %v2110
        %v2112 = vpop.f32.mrb[0].mxu0
        %2113 = vmatprep.mubr.f32.mxu0 0.0
        %2114 = vmatmul.mubr.f32.gmra.mrb[0].mxu0 %v1897
        %v2115 = vpop.f32.mrb[0].mxu0
        %v2116 = vadd.f32 0.0, %v2115
        %v2117 = vpop.f32.mrb[0].mxu0
        %2118 = vmatprep.mubr.f32.mxu0 0.0
        %2119 = vmatmul.mubr.f32.gmra.mrb[0].mxu0 %v1898
        %v2120 = vpop.f32.mrb[0].mxu0
        %v2121 = vadd.f32 0.0, %v2120
        %v2122 = vpop.f32.mrb[0].mxu0
        %2123 = vmatprep.mubr.f32.mxu0 0.0
        %2124 = vmatmul.mubr.f32.gmra.mrb[0].mxu0 %v1899
        %v2125 = vpop.f32.mrb[0].mxu0
        %v2126 = vadd.f32 0.0, %v2125
        %v2127 = vpop.f32.mrb[0].mxu0
        %2128 = vmatprep.mubr.f32.mxu0 0.0
        %2129 = vmatmul.mubr.f32.gmra.mrb[0].mxu0 %v1900
        %v2130 = vpop.f32.mrb[0].mxu0
        %v2131 = vadd.f32 0.0, %v2130
        %v2132 = vpop.f32.mrb[0].mxu0
        %2133 = vmatprep.mubr.f32.mxu0 0.0
        %2134 = vmatmul.mubr.f32.gmra.mrb[0].mxu0 %v1901
        %v2135 = vpop.f32.mrb[0].mxu0
        %v2136 = vadd.f32 0.0, %v2135
        %v2137 = vpop.f32.mrb[0].mxu0
        %2138 = vmatprep.mubr.f32.mxu0 0.0
        %2139 = vmatmul.mubr.f32.gmra.mrb[0].mxu0 %v1902
        %v2140 = vpop.f32.mrb[0].mxu0
        %v2141 = vadd.f32 0.0, %v2140
        %v2142 = vpop.f32.mrb[0].mxu0
        %2143 = vmatprep.mubr.f32.mxu0 0.0
        %2144 = vmatmul.mubr.f32.gmra.mrb[0].mxu0 %v1903
        %v2145 = vpop.f32.mrb[0].mxu0
        %v2146 = vadd.f32 0.0, %v2145
        %v2147 = vpop.f32.mrb[0].mxu0
        %2148 = vmatprep.mubr.f32.mxu0 0.0
        %2149 = vmatmul.mubr.f32.gmra.mrb[0].mxu0 %v1904
        %v2150 = vpop.f32.mrb[0].mxu0
        %v2151 = vadd.f32 0.0, %v2150
        %v2152 = vpop.f32.mrb[0].mxu0
        %2153 = vmatprep.mubr.f32.mxu0 0.0
        %2154 = vmatmul.mubr.f32.gmra.mrb[0].mxu0 %v1905
        %v2155 = vpop.f32.mrb[0].mxu0
        %v2156 = vadd.f32 0.0, %v2155
        %v2157 = vpop.f32.mrb[0].mxu0
        %2158 = vmatprep.mubr.f32.mxu0 0.0
        %2159 = vmatmul.mubr.f32.gmra.mrb[0].mxu0 %v1906
        %v2160 = vpop.f32.mrb[0].mxu0
        %v2161 = vadd.f32 0.0, %v2160
        %v2162 = vpop.f32.mrb[0].mxu0
        %2163 = vdwg.mxu0
        %2164 = vmatprep.subr.mxu0 0.0
        %2165 = vmatpush1.msra.mxu0 %v1907
        %2166 = vmatprep.subr.mxu0 0.0
        %2167 = vmatpush1.msra.mxu0 %v1908
        %2168 = vmatprep.subr.mxu0 0.0
        %2169 = vmatpush1.msra.mxu0 %v1909
        %2170 = vmatprep.subr.mxu0 0.0
        %2171 = vmatpush1.msra.mxu0 %v1910
        %2172 = vmatprep.subr.mxu0 0.0
        %2173 = vmatpush1.msra.mxu0 %v1911
        %2174 = vmatprep.subr.mxu0 0.0
        %2175 = vmatpush1.msra.mxu0 %v1912
        %2176 = vmatprep.subr.mxu0 0.0
        %2177 = vmatpush1.msra.mxu0 %v1913
        %2178 = vmatprep.subr.mxu0 0.0
        %2179 = vmatpush1.msra.mxu0 %v1914
        %2180 = vmatprep.subr.mxu0 0.0
        %2181 = vmatpush1.msra.mxu0 %v1915
        %2182 = vmatprep.subr.mxu0 0.0
        %2183 = vmatpush1.msra.mxu0 %v1916
        %2184 = vmatprep.subr.mxu0 0.0
        %2185 = vmatpush1.msra.mxu0 %v1917
        %2186 = vmatprep.subr.mxu0 0.0
        %2187 = vmatpush1.msra.mxu0 %v1918
        %2188 = vmatprep.subr.mxu0 0.0
        %2189 = vmatpush1.msra.mxu0 %v1919
        %2190 = vmatprep.subr.mxu0 0.0
        %2191 = vmatpush1.msra.mxu0 %v1920
        %2192 = vmatprep.subr.mxu0 0.0
        %2193 = vmatpush1.msra.mxu0 %v1921
        %2194 = vmatprep.subr.mxu0 0.0
        %2195 = vmatpush1.msra.mxu0 %v1922
        %2196 = vmatprep.subr.mxu0 0.0
        %2197 = vmatpush1.msra.mxu0 0.0
        %2198 = vmatprep.subr.mxu0 0.0
        %2199 = vmatpush1.msra.mxu0 0.0
        %2200 = vmatprep.subr.mxu0 0.0
        %2201 = vmatpush1.msra.mxu0 0.0
        %2202 = vmatprep.subr.mxu0 0.0
        %2203 = vmatpush1.msra.mxu0 0.0
        %2204 = vmatprep.subr.mxu0 0.0
        %2205 = vmatpush1.msra.mxu0 0.0
        %2206 = vmatprep.subr.mxu0 0.0
        %2207 = vmatpush1.msra.mxu0 0.0
        %2208 = vmatprep.subr.mxu0 0.0
        %2209 = vmatpush1.msra.mxu0 0.0
        %2210 = vmatprep.subr.mxu0 0.0
        %2211 = vmatpush1.msra.mxu0 0.0
        %2212 = vmatprep.subr.mxu0 0.0
        %2213 = vmatpush1.msra.mxu0 0.0
        %2214 = vmatprep.subr.mxu0 0.0
        %2215 = vmatpush1.msra.mxu0 0.0
        %2216 = vmatprep.subr.mxu0 0.0
        %2217 = vmatpush1.msra.mxu0 0.0
        %2218 = vmatprep.subr.mxu0 0.0
        %2219 = vmatpush1.msra.mxu0 0.0
        %2220 = vmatprep.subr.mxu0 0.0
        %2221 = vmatpush1.msra.mxu0 0.0
        %2222 = vmatprep.subr.mxu0 0.0
        %2223 = vmatpush1.msra.mxu0 0.0
        %2224 = vmatprep.subr.mxu0 0.0
        %2225 = vmatpush1.msra.mxu0 0.0
        %2226 = vmatprep.subr.mxu0 0.0
        %2227 = vmatpush1.msra.mxu0 0.0
        %2228 = vmatprep.mubr.f32.mxu0 0.0
        %2229 = vmatmul.mubr.f32.gmra.mrb[0].mxu0 %v339
        %v2230 = vpop.f32.mrb[0].mxu0
        %v2231 = vadd.f32 %v2006, %v2230
        %v2232 = vpop.f32.mrb[0].mxu0
        %2233 = vmatprep.mubr.f32.mxu0 0.0
        %2234 = vmatmul.mubr.f32.gmra.mrb[0].mxu0 %v340
        %v2235 = vpop.f32.mrb[0].mxu0
        %v2236 = vadd.f32 %v2011, %v2235
        %v2237 = vpop.f32.mrb[0].mxu0
        %2238 = vmatprep.mubr.f32.mxu0 0.0
        %2239 = vmatmul.mubr.f32.gmra.mrb[0].mxu0 %v341
        %v2240 = vpop.f32.mrb[0].mxu0
        %v2241 = vadd.f32 %v2016, %v2240
        %v2242 = vpop.f32.mrb[0].mxu0
        %2243 = vmatprep.mubr.f32.mxu0 0.0
        %2244 = vmatmul.mubr.f32.gmra.mrb[0].mxu0 %v342
        %v2245 = vpop.f32.mrb[0].mxu0
        %v2246 = vadd.f32 %v2021, %v2245
        %v2247 = vpop.f32.mrb[0].mxu0
        %2248 = vmatprep.mubr.f32.mxu0 0.0
        %2249 = vmatmul.mubr.f32.gmra.mrb[0].mxu0 %v343
        %v2250 = vpop.f32.mrb[0].mxu0
        %v2251 = vadd.f32 %v2026, %v2250
        %v2252 = vpop.f32.mrb[0].mxu0
        %2253 = vmatprep.mubr.f32.mxu0 0.0
        %2254 = vmatmul.mubr.f32.gmra.mrb[0].mxu0 %v344
        %v2255 = vpop.f32.mrb[0].mxu0
        %v2256 = vadd.f32 %v2031, %v2255
        %v2257 = vpop.f32.mrb[0].mxu0
        %2258 = vmatprep.mubr.f32.mxu0 0.0
        %2259 = vmatmul.mubr.f32.gmra.mrb[0].mxu0 %v345
        %v2260 = vpop.f32.mrb[0].mxu0
        %v2261 = vadd.f32 %v2036, %v2260
        %v2262 = vpop.f32.mrb[0].mxu0
        %2263 = vmatprep.mubr.f32.mxu0 0.0
        %2264 = vmatmul.mubr.f32.gmra.mrb[0].mxu0 %v346
        %v2265 = vpop.f32.mrb[0].mxu0
        %v2266 = vadd.f32 %v2041, %v2265
        %v2267 = vpop.f32.mrb[0].mxu0
        %2268 = vmatprep.mubr.f32.mxu0 0.0
        %2269 = vmatmul.mubr.f32.gmra.mrb[0].mxu0 %v347
        %v2270 = vpop.f32.mrb[0].mxu0
        %v2271 = vadd.f32 %v2046, %v2270
        %v2272 = vpop.f32.mrb[0].mxu0
        %2273 = vmatprep.mubr.f32.mxu0 0.0
        %2274 = vmatmul.mubr.f32.gmra.mrb[0].mxu0 %v348
        %v2275 = vpop.f32.mrb[0].mxu0
        %v2276 = vadd.f32 %v2051, %v2275
        %v2277 = vpop.f32.mrb[0].mxu0
        %2278 = vmatprep.mubr.f32.mxu0 0.0
        %2279 = vmatmul.mubr.f32.gmra.mrb[0].mxu0 %v349
        %v2280 = vpop.f32.mrb[0].mxu0
        %v2281 = vadd.f32 %v2056, %v2280
        %v2282 = vpop.f32.mrb[0].mxu0
        %2283 = vmatprep.mubr.f32.mxu0 0.0
        %2284 = vmatmul.mubr.f32.gmra.mrb[0].mxu0 %v350
        %v2285 = vpop.f32.mrb[0].mxu0
        %v2286 = vadd.f32 %v2061, %v2285
        %v2287 = vpop.f32.mrb[0].mxu0
        %2288 = vmatprep.mubr.f32.mxu0 0.0
        %2289 = vmatmul.mubr.f32.gmra.mrb[0].mxu0 %v351
        %v2290 = vpop.f32.mrb[0].mxu0
        %v2291 = vadd.f32 %v2066, %v2290
        %v2292 = vpop.f32.mrb[0].mxu0
        %2293 = vmatprep.mubr.f32.mxu0 0.0
        %2294 = vmatmul.mubr.f32.gmra.mrb[0].mxu0 %v352
        %v2295 = vpop.f32.mrb[0].mxu0
        %v2296 = vadd.f32 %v2071, %v2295
        %v2297 = vpop.f32.mrb[0].mxu0
        %2298 = vmatprep.mubr.f32.mxu0 0.0
        %2299 = vmatmul.mubr.f32.gmra.mrb[0].mxu0 %v353
        %v2300 = vpop.f32.mrb[0].mxu0
        %v2301 = vadd.f32 %v2076, %v2300
        %v2302 = vpop.f32.mrb[0].mxu0
        %2303 = vmatprep.mubr.f32.mxu0 0.0
        %2304 = vmatmul.mubr.f32.gmra.mrb[0].mxu0 %v354
        %v2305 = vpop.f32.mrb[0].mxu0
        %v2306 = vadd.f32 %v2081, %v2305
        %v2307 = vpop.f32.mrb[0].mxu0
        %2308 = vmatprep.mubr.f32.mxu0 0.0
        %2309 = vmatmul.mubr.f32.gmra.mrb[0].mxu0 %v355
        %v2310 = vpop.f32.mrb[0].mxu0
        %v2311 = vadd.f32 %v2086, %v2310
        %v2312 = vpop.f32.mrb[0].mxu0
        %2313 = vmatprep.mubr.f32.mxu0 0.0
        %2314 = vmatmul.mubr.f32.gmra.mrb[0].mxu0 %v356
        %v2315 = vpop.f32.mrb[0].mxu0
        %v2316 = vadd.f32 %v2091, %v2315
        %v2317 = vpop.f32.mrb[0].mxu0
        %2318 = vmatprep.mubr.f32.mxu0 0.0
        %2319 = vmatmul.mubr.f32.gmra.mrb[0].mxu0 %v357
        %v2320 = vpop.f32.mrb[0].mxu0
        %v2321 = vadd.f32 %v2096, %v2320
        %v2322 = vpop.f32.mrb[0].mxu0
        %2323 = vmatprep.mubr.f32.mxu0 0.0
        %2324 = vmatmul.mubr.f32.gmra.mrb[0].mxu0 %v358
        %v2325 = vpop.f32.mrb[0].mxu0
        %v2326 = vadd.f32 %v2101, %v2325
        %v2327 = vpop.f32.mrb[0].mxu0
        %2328 = vmatprep.mubr.f32.mxu0 0.0
        %2329 = vmatmul.mubr.f32.gmra.mrb[0].mxu0 %v359
        %v2330 = vpop.f32.mrb[0].mxu0
        %v2331 = vadd.f32 %v2106, %v2330
        %v2332 = vpop.f32.mrb[0].mxu0
        %2333 = vmatprep.mubr.f32.mxu0 0.0
        %2334 = vmatmul.mubr.f32.gmra.mrb[0].mxu0 %v360
        %v2335 = vpop.f32.mrb[0].mxu0
        %v2336 = vadd.f32 %v2111, %v2335
        %v2337 = vpop.f32.mrb[0].mxu0
        %2338 = vmatprep.mubr.f32.mxu0 0.0
        %2339 = vmatmul.mubr.f32.gmra.mrb[0].mxu0 %v361
        %v2340 = vpop.f32.mrb[0].mxu0
        %v2341 = vadd.f32 %v2116, %v2340
        %v2342 = vpop.f32.mrb[0].mxu0
        %2343 = vmatprep.mubr.f32.mxu0 0.0
        %2344 = vmatmul.mubr.f32.gmra.mrb[0].mxu0 %v362
        %v2345 = vpop.f32.mrb[0].mxu0
        %v2346 = vadd.f32 %v2121, %v2345
        %v2347 = vpop.f32.mrb[0].mxu0
        %2348 = vmatprep.mubr.f32.mxu0 0.0
        %2349 = vmatmul.mubr.f32.gmra.mrb[0].mxu0 %v363
        %v2350 = vpop.f32.mrb[0].mxu0
        %v2351 = vadd.f32 %v2126, %v2350
        %v2352 = vpop.f32.mrb[0].mxu0
        %2353 = vmatprep.mubr.f32.mxu0 0.0
        %2354 = vmatmul.mubr.f32.gmra.mrb[0].mxu0 %v364
        %v2355 = vpop.f32.mrb[0].mxu0
        %v2356 = vadd.f32 %v2131, %v2355
        %v2357 = vpop.f32.mrb[0].mxu0
        %2358 = vmatprep.mubr.f32.mxu0 0.0
        %2359 = vmatmul.mubr.f32.gmra.mrb[0].mxu0 %v365
        %v2360 = vpop.f32.mrb[0].mxu0
        %v2361 = vadd.f32 %v2136, %v2360
        %v2362 = vpop.f32.mrb[0].mxu0
        %2363 = vmatprep.mubr.f32.mxu0 0.0
        %2364 = vmatmul.mubr.f32.gmra.mrb[0].mxu0 %v366
        %v2365 = vpop.f32.mrb[0].mxu0
        %v2366 = vadd.f32 %v2141, %v2365
        %v2367 = vpop.f32.mrb[0].mxu0
        %2368 = vmatprep.mubr.f32.mxu0 0.0
        %2369 = vmatmul.mubr.f32.gmra.mrb[0].mxu0 %v367
        %v2370 = vpop.f32.mrb[0].mxu0
        %v2371 = vadd.f32 %v2146, %v2370
        %v2372 = vpop.f32.mrb[0].mxu0
        %2373 = vmatprep.mubr.f32.mxu0 0.0
        %2374 = vmatmul.mubr.f32.gmra.mrb[0].mxu0 %v368
        %v2375 = vpop.f32.mrb[0].mxu0
        %v2376 = vadd.f32 %v2151, %v2375
        %v2377 = vpop.f32.mrb[0].mxu0
        %2378 = vmatprep.mubr.f32.mxu0 0.0
        %2379 = vmatmul.mubr.f32.gmra.mrb[0].mxu0 %v369
        %v2380 = vpop.f32.mrb[0].mxu0
        %v2381 = vadd.f32 %v2156, %v2380
        %v2382 = vpop.f32.mrb[0].mxu0
        %2383 = vmatprep.mubr.f32.mxu0 0.0
        %2384 = vmatmul.mubr.f32.gmra.mrb[0].mxu0 %v370
        %v2385 = vpop.f32.mrb[0].mxu0
        %v2386 = vadd.f32 %v2161, %v2385
        %v2387 = vpop.f32.mrb[0].mxu0
        %2388 = vdwg.mxu0
        %2389 = vst [vmem:[%s137] sm:$0xff] %v2231
        %2390 = vst [vmem:[%s137 + $0x8] sm:$0xff] %v2236
        %2391 = vst [vmem:[%s137 + $0x10] sm:$0xff] %v2241
        %2392 = vst [vmem:[%s137 + $0x18] sm:$0xff] %v2246
        %2393 = vst [vmem:[%s137 + $0x20] sm:$0xff] %v2251
        %2394 = vst [vmem:[%s137 + $0x28] sm:$0xff] %v2256
        %2395 = vst [vmem:[%s137 + $0x30] sm:$0xff] %v2261
        %2396 = vst [vmem:[%s137 + $0x38] sm:$0xff] %v2266
        %2397 = vst [vmem:[%s137 + $0x40] sm:$0xff] %v2271
        %2398 = vst [vmem:[%s137 + $0x48] sm:$0xff] %v2276
        %2399 = vst [vmem:[%s137 + $0x50] sm:$0xff] %v2281
        %2400 = vst [vmem:[%s137 + $0x58] sm:$0xff] %v2286
        %2401 = vst [vmem:[%s137 + $0x60] sm:$0xff] %v2291
        %2402 = vst [vmem:[%s137 + $0x68] sm:$0xff] %v2296
        %2403 = vst [vmem:[%s137 + $0x70] sm:$0xff] %v2301
        %2404 = vst [vmem:[%s137 + $0x78] sm:$0xff] %v2306
        %2405 = vst [vmem:[%s137 + $0x80] sm:$0xff] %v2311
        %2406 = vst [vmem:[%s137 + $0x88] sm:$0xff] %v2316
        %2407 = vst [vmem:[%s137 + $0x90] sm:$0xff] %v2321
        %2408 = vst [vmem:[%s137 + $0x98] sm:$0xff] %v2326
        %2409 = vst [vmem:[%s137 + $0xa0] sm:$0xff] %v2331
        %2410 = vst [vmem:[%s137 + $0xa8] sm:$0xff] %v2336
        %2411 = vst [vmem:[%s137 + $0xb0] sm:$0xff] %v2341
        %2412 = vst [vmem:[%s137 + $0xb8] sm:$0xff] %v2346
        %2413 = vst [vmem:[%s137 + $0xc0] sm:$0xff] %v2351
        %2414 = vst [vmem:[%s137 + $0xc8] sm:$0xff] %v2356
        %2415 = vst [vmem:[%s137 + $0xd0] sm:$0xff] %v2361
        %2416 = vst [vmem:[%s137 + $0xd8] sm:$0xff] %v2366
        %2417 = vst [vmem:[%s137 + $0xe0] sm:$0xff] %v2371
        %2418 = vst [vmem:[%s137 + $0xe8] sm:$0xff] %v2376
        %2419 = vst [vmem:[%s137 + $0xf0] sm:$0xff] %v2381
        %2420 = vst [vmem:[%s137 + $0xf8] sm:$0xff] %v2386
        %s2421 = sand.u32 %s71, 1
        %s2422 = scalar_lea.sflag [#allocation3], %s2421
        %s2423 = sand.u32 %s71, 1
        %s2424 = smul.addr %s2423, 256
        %s2425 = scalar_lea.vmem [#allocation2], %s2424
        // Predicated region
        $region29: #{tpu_custom_call.1} parent=27 // pred_check
          %p2426 = pneg %p81
        $region30: #{tpu_custom_call.1} parent=27 // pred_check_branch
          %2428 = sbr.rel (%p2426) target = $region32
        $region31: #{tpu_custom_call.1} parent=27 // pred_region
          %s2429 = smul.u32 32, %s16
          %s2431 = ssub.s32 4096, 4096
          %2432 = vsyncadd %s2422, %s2431
          %s2433 = smul.addr %s2429, 128
          %s2434 = scalar_lea.hbm %s2, %s2433
          %s2435 = sshll.u32 %s2425, 4
          %s2436 = int_to_ptr.vmem [resolvable:$true] %s2435
          %2441 = dma.vmem_to_hbm [thread:$0]  %s2436, 4096, %s2434, %s2422, 128, 128, 8
        $region32: #{tpu_custom_call.1} parent=27 // pred_fallthru
          _
      $region28: #{tpu_custom_call.1} parent=5 // pred_fallthru
        _
      %p2442 = scmp.le.s32.totalorder 2, %s11
      // Predicated region
      $region33: #{tpu_custom_call.1} parent=5 // pred_check
        %p2443 = pneg %p2442
      $region34: #{tpu_custom_call.1} parent=5 // pred_check_branch
        %2445 = sbr.rel (%p2443) target = $region36
      $region35: #{tpu_custom_call.1} parent=5 // pred_region
        %s2446 = ssub.s32 %s11, 2
        // Predicated region
        $region37: #{tpu_custom_call.1} parent=35 // pred_check
          %p2447 = pneg %p87
        $region38: #{tpu_custom_call.1} parent=35 // pred_check_branch
          %2449 = sbr.rel (%p2447) target = $region40
        $region39: #{tpu_custom_call.1} parent=35 // pred_region
          %s2450 = sand.u32 %s72, 1
          %s2451 = scalar_lea.sflag [#allocation3], %s2450
          %s2452 = sand.u32 %s72, 1
          %s2453 = smul.addr %s2452, 256
          %s2454 = scalar_lea.vmem [#allocation2], %s2453
          %2455 = dma.done %s2451, 4096
        $region40: #{tpu_custom_call.1} parent=35 // pred_fallthru
          _
      $region36: #{tpu_custom_call.1} parent=5 // pred_fallthru
        _
    $region6: #{tpu_custom_call.1} parent=1 // loop_footer
      %s15 = sadd.s32 1, %s11
    $region7: #{tpu_custom_call.1} parent=1 // loop_footer_branch
      %10 = sbr.rel target = $region3
    $region8: #{tpu_custom_call.1} parent=1 // loop_exit
      _
    %2456 = vsyncpa [#allocation3], 1
    %s2457 = scalar_lea.sflag [#allocation3], 1
    %2458 = vsyncpa %s2457, 1

</llo_original>
